<compile_context>
chip_gen: v7x
topology: tpu7x:2x2x1
jax: 0.10.0
libtpu: 0.0.40
codegen_flags: <defaults>
</compile_context>

<pallas_src>
import functools

import jax
import jax.numpy as jnp
from jax import lax
from jax.experimental import pallas as pl
from jax.experimental.pallas import tpu as pltpu


def _fused_mlp_kernel(x_ref, mask_ref, mask_t_ref, w1d_ref, w1e_ref, pk_ref,
                      o_ref, h_ref, *, rcd_num, head_num, mode, batch_tile):
    i = pl.program_id(0)
    nb = pl.num_programs(0)

    x = x_ref[...].astype(jnp.float32)                      # (Bt, N, D)
    Bt, N, D = x.shape
    dk = D // head_num
    scale = float(dk) ** -0.5

    profile = x[:, 0:1, :]                                  # (Bt, 1, D)
    dialogs = x[:, 1:1 + rcd_num, :]                        # (Bt, R, D)
    extra = x[:, N - 1, :]                                  # (Bt, D)

    if mode == 'profile':
        q = k = v = profile
    elif mode == 'dialogs':
        q = k = v = dialogs
    else:  # 'full'
        q, k, v = profile, dialogs, dialogs
    Lq, Lk = q.shape[1], k.shape[1]

    # One-hot lane->head matrix (hoisted: built once in the wrapper, DMA'd as
    # a tiny resident operand). Exact in bf16 (values are 0/1).
    mask_bf16 = mask_ref[...].astype(jnp.bfloat16)          # (D, Hh)
    mask_t = mask_t_ref[...]                                # (Hh, D) f32

    # Per-head scores at head-lane width: s[b,i,j,h] = scale * sum_{l in h} q*k.
    prod = q[:, :, None, :] * k[:, None, :, :]              # (Bt, Lq, Lk, D)
    # TODO(synk): Mosaic dot_general only takes 2-D operands, so the lane
    # contraction goes through an explicit 2-D flatten; for large rcd_num
    # switch to a chunked online-softmax loop over the key axis so prod never
    # materializes at full Lk.
    prod2 = prod.reshape(Bt * Lq * Lk, D).astype(jnp.bfloat16)
    s = jnp.dot(prod2, mask_bf16, preferred_element_type=jnp.float32)
    s = s.reshape(Bt, Lq, Lk, head_num) * scale             # (Bt, Lq, Lk, Hh)

    # Softmax over the key axis, at head_num lanes (no dk-replicated work).
    s = s - jnp.max(s, axis=2, keepdims=True)
    p = jnp.exp(s)
    p = p * pl.reciprocal(jnp.sum(p, axis=2, keepdims=True), approx=True)
    # TODO(synk): attention dropout omitted (inference-mode identity).

    # Broadcast head weights back to D lanes via the transposed one-hot
    # (exact, f32), then P@V is a VPU multiply + sublane reduce.
    p_full = jnp.dot(p.reshape(Bt * Lq * Lk, head_num), mask_t,
                     preferred_element_type=jnp.float32)
    p_full = p_full.reshape(Bt, Lq, Lk, D)
    attn = jnp.sum(p_full * v[:, None, :, :], axis=2)       # (Bt, Lq, D)

    if mode == 'dialogs':
        dr_emb = jnp.mean(attn, axis=1)                     # (Bt, D)
    else:
        dr_emb = attn.reshape(Bt, D)                        # Lq == 1

    # fc1 without materializing the (Bt, 2D) concat: split-weight bf16 MXU
    # dots (weights stored bf16 -> half the weight DMA), f32 accumulate.
    h = (jnp.dot(dr_emb.astype(jnp.bfloat16), w1d_ref[...],
                 preferred_element_type=jnp.float32)
         + jnp.dot(extra.astype(jnp.bfloat16), w1e_ref[...],
                   preferred_element_type=jnp.float32)
         + pk_ref[0:1, :])                                  # (Bt, H)

    # Stash this tile's pre-BN activations; BatchNorm1d (train mode) needs
    # FULL-batch statistics, so the epilogue runs once on the last tile.
    h_ref[pl.ds(i * batch_tile, batch_tile), :] = h

    @pl.when(i == nb - 1)
    def _():
        hb = h_ref[...]                                     # (B, H) full batch
        gamma, beta, w2 = pk_ref[1:2, :], pk_ref[2:3, :], pk_ref[3:4, :]
        b2 = pk_ref[4:5, 0:1]
        # BatchNorm1d (training-mode batch stats, biased variance, eps=1e-5).
        mean = jnp.mean(hb, axis=0, keepdims=True)
        var = jnp.mean((hb - mean) ** 2, axis=0, keepdims=True)
        hn = (hb - mean) * lax.rsqrt(var + 1e-5)
        hn = hn * gamma + beta
        hn = jnp.maximum(hn, 0.0)                           # ReLU
        # fc2 as VPU multiply + lane reduce; numerically-stable sigmoid (EUP).
        logit = jnp.sum(hn * w2, axis=-1, keepdims=True) + b2   # (B, 1)
        sig = 0.5 * (jnp.tanh(0.5 * logit) + 1.0)
        o_ref[...] = sig.T.astype(o_ref.dtype)              # lane-dense (1, B)


def _resident(shape):
    zeros = (0,) * len(shape)
    return pl.BlockSpec(shape, lambda i: zeros)


def mlp_forward(x, params, *, rcd_num, head_num, mode):
    B, N, D = x.shape
    H = params["pk"].shape[-1]

    # Batch tiling: biggest power-of-two divisor of B up to 128 (sublane
    # aligned, and B divides exactly — BN stats need every real row).
    batch_tile = B
    for cand in (128, 64, 32, 16, 8):
        if B % cand == 0:
            batch_tile = cand
            break
    nb = B // batch_tile

    if mode == 'profile':
        Lq = Lk = 1
    elif mode == 'dialogs':
        Lq = Lk = rcd_num
    else:
        Lq, Lk = 1, rcd_num

    # Explicit VMEM budget (v7x: 64 MiB physical; v5e: 16 MiB default scoped).
    # 4x margin absorbs (8,128) tile padding at small shapes.
    est = (2 * batch_tile * N * D * 4                       # x tile, double-buffered
           + batch_tile * Lq * Lk * (6 * D + 8 * head_num)  # prod/p_full + s/p
           + batch_tile * Lq * D * 4                        # attn
           + 2 * (2 * D * H * 2)                            # bf16 w1 halves
           + (5 * H + 2 * head_num * D) * 4                 # packed params + masks
           + B * H * 4 + 2 * B * 4)                         # h scratch + out row
    vmem_limit = int(min(max(4 * est, 16 << 20), 48 << 20))

    kernel = functools.partial(_fused_mlp_kernel, rcd_num=rcd_num,
                               head_num=head_num, mode=mode,
                               batch_tile=batch_tile)

    out_row = pl.pallas_call(
        kernel,
        out_shape=jax.ShapeDtypeStruct((1, B), jnp.float32),
        grid=(nb,),
        in_specs=[
            pl.BlockSpec((batch_tile, N, D), lambda i: (i, 0, 0)),  # x (tiled)
            _resident((D, head_num)),    # lane->head one-hot
            _resident((head_num, D)),    # its transpose
            _resident((D, H)),           # w1, dr_emb half (bf16)
            _resident((D, H)),           # w1, extra-feature half (bf16)
            _resident((5, H)),           # packed b1 / gamma / beta / w2 / b2
        ],
        out_specs=_resident((1, B)),
        scratch_shapes=[pltpu.VMEM((B, H), jnp.float32)],   # pre-BN acts, full batch
        # Batch axis is "arbitrary": BN train-mode stats span the FULL batch,
        # so the last tile consumes every tile's h from the scratch.
        # TODO(synk): for v7x megacore, split BN/fc2 into a second pallas_call
        # and mark this axis "parallel".
        compiler_params=pltpu.CompilerParams(
            dimension_semantics=("arbitrary",),
            vmem_limit_bytes=vmem_limit),
    )(x, params["mask"], params["mask_t"], params["w1_dr"], params["w1_ex"],
      params["pk"])
    return out_row.reshape(B, 1)


def mlp_reference(x, params, *, rcd_num, head_num, mode):
    """Pure-JAX mirror of the PyTorch forward (train-mode BN, no dropout)."""
    B, N, D = x.shape
    dk = D // head_num
    profile = x[:, 0:1, :]
    dialogs = x[:, 1:1 + rcd_num, :]
    if mode == 'profile':
        q = k = v = profile
    elif mode == 'dialogs':
        q = k = v = dialogs
    else:
        q, k, v = profile, dialogs, dialogs
    Lq, Lk = q.shape[1], k.shape[1]
    qh = q.reshape(B, Lq, head_num, dk).transpose(0, 2, 1, 3)
    kh = k.reshape(B, Lk, head_num, dk).transpose(0, 2, 1, 3)
    vh = v.reshape(B, Lk, head_num, dk).transpose(0, 2, 1, 3)
    s = jnp.einsum('bhqd,bhkd->bhqk', qh, kh) * (dk ** -0.5)
    p = jax.nn.softmax(s, axis=-1)
    attn = jnp.einsum('bhqk,bhkd->bhqd', p, vh)
    attn = attn.transpose(0, 2, 1, 3).reshape(B, Lq, D)
    dr = jnp.mean(attn, axis=1) if mode == 'dialogs' else attn.reshape(B, D)
    feats = jnp.concatenate([dr, x[:, -1, :]], axis=1)
    w1 = jnp.concatenate([params["w1_dr"], params["w1_ex"]],
                         axis=0).astype(jnp.float32)
    pk = params["pk"]
    h = feats @ w1 + pk[0]
    mean = h.mean(axis=0)
    var = ((h - mean) ** 2).mean(axis=0)
    hn = (h - mean) / jnp.sqrt(var + 1e-5) * pk[1] + pk[2]
    hn = jnp.maximum(hn, 0.0)
    logit = jnp.sum(hn * pk[3], axis=-1, keepdims=True) + pk[4, 0]
    return jax.nn.sigmoid(logit)


class MLPPallas:
    """Pallas-TPU forward for Modules/MLP.py.

    Matches the PyTorch module's default .train() forward: BatchNorm1d uses
    (biased) batch statistics of the current batch, dropout is the
    inference-mode identity.  MXU inputs are fed in bfloat16 (f32 accumulate).
    """

    def __init__(self, in_size, hid_size, head_num, add_self_att_on, key):
        assert in_size % head_num == 0, "in_size must be divisible by head_num"
        self.in_size = in_size
        self.hid_size = hid_size
        self.head_num = head_num
        self.add_self_att_on = add_self_att_on

        k1, k2, k3, k4 = jax.random.split(key, 4)
        fan1 = in_size * 2
        b1lim = fan1 ** -0.5
        w1 = jax.random.uniform(k1, (fan1, hid_size), jnp.float32, -b1lim, b1lim)
        b2lim = hid_size ** -0.5
        b1 = jax.random.uniform(k2, (hid_size,), jnp.float32, -b1lim, b1lim)
        gamma = jnp.ones((hid_size,), jnp.float32)      # bn1 weight
        beta = jnp.zeros((hid_size,), jnp.float32)      # bn1 bias
        w2 = jax.random.uniform(k3, (hid_size,), jnp.float32, -b2lim, b2lim)
        b2 = jax.random.uniform(k4, (), jnp.float32, -b2lim, b2lim)

        dk = in_size // head_num
        lane_head = jnp.arange(in_size) // dk
        mask = (lane_head[:, None] == jnp.arange(head_num)[None, :]
                ).astype(jnp.float32)                   # (D, Hh) one-hot

        self.params = dict(
            w1_dr=w1[:in_size].astype(jnp.bfloat16),    # (D, H) bf16
            w1_ex=w1[in_size:].astype(jnp.bfloat16),    # (D, H) bf16
            # b1/gamma/beta/w2/b2 packed in one (5, H) tile (single tiny DMA).
            pk=jnp.stack([b1, gamma, beta, w2,
                          jnp.full((hid_size,), b2, jnp.float32)], axis=0),
            mask=mask,
            mask_t=mask.T,
        )

    def __call__(self, x, rcd_num):
        return mlp_forward(x, self.params, rcd_num=rcd_num,
                           head_num=self.head_num, mode=self.add_self_att_on)


if __name__ == "__main__":
    key = jax.random.PRNGKey(0)
    kx, kp = jax.random.split(key)

    B, in_size, hid_size = 4, 32, 32
    rcd_num, head_num = 3, 4
    N = 1 + rcd_num + 1                  # profile + dialogs + extra-feature row
    x = jax.random.normal(kx, (B, N, in_size), jnp.float32)

    for mode in ('full', 'dialogs', 'profile'):
        model = MLPPallas(in_size, hid_size, head_num, add_self_att_on=mode, key=kp)
        out = jax.block_until_ready(model(x, rcd_num))
        assert out.shape == (B, 1)
        assert bool(jnp.all(jnp.isfinite(out)))
        ref = mlp_reference(x, model.params, rcd_num=rcd_num,
                            head_num=head_num, mode=mode)
        # bf16 MXU inputs + approx softmax reciprocal => loose tolerance.
        assert float(jnp.max(jnp.abs(out - ref))) < 5e-2
    print("KERNEL_OK")
</pallas_src>

<mosaic_0001>
module attributes {stable_mosaic.version = 11 : i64} {
  func.func @_fused_mlp_kernel(%arg0: i32, %arg1: memref<4x5x32xf32, #tpu.memory_space<vmem>>, %arg2: memref<32x4xf32, #tpu.memory_space<vmem>>, %arg3: memref<4x32xf32, #tpu.memory_space<vmem>>, %arg4: memref<32x32xbf16, #tpu.memory_space<vmem>>, %arg5: memref<32x32xbf16, #tpu.memory_space<vmem>>, %arg6: memref<5x32xf32, #tpu.memory_space<vmem>>, %arg7: memref<1x4xf32, #tpu.memory_space<vmem>>, %arg8: memref<4x32xf32, #tpu.memory_space<vmem>>) attributes {dimension_semantics = [#tpu.dimension_semantics<arbitrary>], iteration_bounds = array<i64: 1>, scalar_prefetch = 0 : i64, scratch_operands = 1 : i64, tpu.core_type = #tpu.core_type<tc>, window_params = [{transform_indices = @transform_0, window_bounds = array<i64: 4, 5, 32>}, {pipeline_mode = #tpu.pipeline_mode<synchronous>, transform_indices = @transform_1, window_bounds = array<i64: 32, 4>}, {pipeline_mode = #tpu.pipeline_mode<synchronous>, transform_indices = @transform_2, window_bounds = array<i64: 4, 32>}, {pipeline_mode = #tpu.pipeline_mode<synchronous>, transform_indices = @transform_3, window_bounds = array<i64: 32, 32>}, {pipeline_mode = #tpu.pipeline_mode<synchronous>, transform_indices = @transform_4, window_bounds = array<i64: 32, 32>}, {pipeline_mode = #tpu.pipeline_mode<synchronous>, transform_indices = @transform_5, window_bounds = array<i64: 5, 32>}, {pipeline_mode = #tpu.pipeline_mode<synchronous>, transform_indices = @transform_6, window_bounds = array<i64: 1, 4>}]} {
    %c0 = arith.constant 0 : index
    %c0_0 = arith.constant 0 : index
    %c0_1 = arith.constant 0 : index
    %0 = vector.load %arg1[%c0, %c0_0, %c0_1] : memref<4x5x32xf32, #tpu.memory_space<vmem>>, vector<4x5x32xf32>
    %1 = vector.extract_strided_slice %0 {offsets = [0, 0, 0], sizes = [4, 1, 32], strides = [1, 1, 1]} : vector<4x5x32xf32> to vector<4x1x32xf32>
    %2 = vector.extract_strided_slice %0 {offsets = [0, 1, 0], sizes = [4, 3, 32], strides = [1, 1, 1]} : vector<4x5x32xf32> to vector<4x3x32xf32>
    %3 = vector.extract_strided_slice %0 {offsets = [0, 4, 0], sizes = [4, 1, 32], strides = [1, 1, 1]} : vector<4x5x32xf32> to vector<4x1x32xf32>
    %4 = vector.shape_cast %3 : vector<4x1x32xf32> to vector<4x32xf32>
    %c0_2 = arith.constant 0 : index
    %c0_3 = arith.constant 0 : index
    %5 = vector.load %arg2[%c0_2, %c0_3] : memref<32x4xf32, #tpu.memory_space<vmem>>, vector<32x4xf32>
    %6 = arith.truncf %5 : vector<32x4xf32> to vector<32x4xbf16>
    %c0_4 = arith.constant 0 : index
    %c0_5 = arith.constant 0 : index
    %7 = vector.load %arg3[%c0_4, %c0_5] : memref<4x32xf32, #tpu.memory_space<vmem>>, vector<4x32xf32>
    %8 = vector.shape_cast %1 : vector<4x1x32xf32> to vector<4x1x1x32xf32>
    %9 = vector.shape_cast %2 : vector<4x3x32xf32> to vector<4x1x3x32xf32>
    %10 = vector.broadcast %8 : vector<4x1x1x32xf32> to vector<4x1x3x32xf32>
    %11 = arith.mulf %10, %9 : vector<4x1x3x32xf32>
    %12 = vector.shape_cast %11 : vector<4x1x3x32xf32> to vector<12x32xf32>
    %13 = arith.truncf %12 : vector<12x32xf32> to vector<12x32xbf16>
    %cst = arith.constant dense<0.000000e+00> : vector<12x4xf32>
    %14 = tpu.matmul %13, %6, %cst {dimension_numbers = #tpu.dot_dimension_numbers<[1], [0], [0], [1], [0, 0, 1, 1], [], []>} : vector<12x32xbf16>, vector<32x4xbf16>, vector<12x4xf32> -> vector<12x4xf32>
    %15 = vector.shape_cast %14 : vector<12x4xf32> to vector<4x1x3x4xf32>
    %cst_6 = arith.constant 0.353553385 : f32
    %16 = vector.broadcast %cst_6 : f32 to vector<4x1x3x4xf32>
    %17 = arith.mulf %15, %16 : vector<4x1x3x4xf32>
    %cst_7 = arith.constant dense<0xFF800000> : vector<4x1x4xf32>
    %18 = vector.multi_reduction <maximumf>, %17, %cst_7 [2] : vector<4x1x3x4xf32> to vector<4x1x4xf32>
    %19 = vector.shape_cast %18 : vector<4x1x4xf32> to vector<4x1x1x4xf32>
    %20 = vector.broadcast %19 : vector<4x1x1x4xf32> to vector<4x1x3x4xf32>
    %21 = arith.subf %17, %20 : vector<4x1x3x4xf32>
    %22 = math.exp %21 : vector<4x1x3x4xf32>
    %cst_8 = arith.constant dense<0.000000e+00> : vector<4x1x4xf32>
    %23 = vector.multi_reduction <add>, %22, %cst_8 [2] : vector<4x1x3x4xf32> to vector<4x1x4xf32>
    %24 = vector.shape_cast %23 : vector<4x1x4xf32> to vector<4x1x1x4xf32>
    %25 = tpu.reciprocal %24 {approx = true} : vector<4x1x1x4xf32> -> vector<4x1x1x4xf32>
    %26 = vector.broadcast %25 : vector<4x1x1x4xf32> to vector<4x1x3x4xf32>
    %27 = arith.mulf %22, %26 : vector<4x1x3x4xf32>
    %28 = vector.shape_cast %27 : vector<4x1x3x4xf32> to vector<12x4xf32>
    %cst_9 = arith.constant dense<0.000000e+00> : vector<12x32xf32>
    %29 = tpu.matmul %28, %7, %cst_9 {dimension_numbers = #tpu.dot_dimension_numbers<[1], [0], [0], [1], [0, 0, 1, 1], [], []>} : vector<12x4xf32>, vector<4x32xf32>, vector<12x32xf32> -> vector<12x32xf32>
    %30 = vector.shape_cast %29 : vector<12x32xf32> to vector<4x1x3x32xf32>
    %31 = vector.shape_cast %2 : vector<4x3x32xf32> to vector<4x1x3x32xf32>
    %32 = arith.mulf %30, %31 : vector<4x1x3x32xf32>
    %cst_10 = arith.constant dense<0.000000e+00> : vector<4x1x32xf32>
    %33 = vector.multi_reduction <add>, %32, %cst_10 [2] : vector<4x1x3x32xf32> to vector<4x1x32xf32>
    %34 = vector.shape_cast %33 : vector<4x1x32xf32> to vector<4x32xf32>
    %35 = arith.truncf %34 : vector<4x32xf32> to vector<4x32xbf16>
    %c0_11 = arith.constant 0 : index
    %c0_12 = arith.constant 0 : index
    %36 = vector.load %arg4[%c0_11, %c0_12] : memref<32x32xbf16, #tpu.memory_space<vmem>>, vector<32x32xbf16>
    %cst_13 = arith.constant dense<0.000000e+00> : vector<4x32xf32>
    %37 = tpu.matmul %35, %36, %cst_13 {dimension_numbers = #tpu.dot_dimension_numbers<[1], [0], [0], [1], [0, 0, 1, 1], [], []>} : vector<4x32xbf16>, vector<32x32xbf16>, vector<4x32xf32> -> vector<4x32xf32>
    %38 = arith.truncf %4 : vector<4x32xf32> to vector<4x32xbf16>
    %c0_14 = arith.constant 0 : index
    %c0_15 = arith.constant 0 : index
    %39 = vector.load %arg5[%c0_14, %c0_15] : memref<32x32xbf16, #tpu.memory_space<vmem>>, vector<32x32xbf16>
    %cst_16 = arith.constant dense<0.000000e+00> : vector<4x32xf32>
    %40 = tpu.matmul %38, %39, %cst_16 {dimension_numbers = #tpu.dot_dimension_numbers<[1], [0], [0], [1], [0, 0, 1, 1], [], []>} : vector<4x32xbf16>, vector<32x32xbf16>, vector<4x32xf32> -> vector<4x32xf32>
    %41 = arith.addf %37, %40 : vector<4x32xf32>
    %c0_17 = arith.constant 0 : index
    %c0_18 = arith.constant 0 : index
    %42 = vector.load %arg6[%c0_17, %c0_18] : memref<5x32xf32, #tpu.memory_space<vmem>>, vector<1x32xf32>
    %43 = vector.broadcast %42 : vector<1x32xf32> to vector<4x32xf32>
    %44 = arith.addf %41, %43 : vector<4x32xf32>
    %c4_i32 = arith.constant 4 : i32
    %45 = arith.muli %arg0, %c4_i32 : i32
    %46 = arith.index_cast %45 : i32 to index
    %c0_19 = arith.constant 0 : index
    %47 = vector.load %arg8[%46, %c0_19] : memref<4x32xf32, #tpu.memory_space<vmem>>, vector<4x32xf32>
    tpu.vector_store %arg8[%46, %c0_19], %44 {strides = array<i32>} : memref<4x32xf32, #tpu.memory_space<vmem>>, vector<4x32xf32>,
    %c0_i32 = arith.constant 0 : i32
    %48 = arith.cmpi eq, %arg0, %c0_i32 : i32
    %49 = arith.extui %48 : i1 to i32
    %c0_i32_20 = arith.constant 0 : i32
    %50 = arith.cmpi ne, %49, %c0_i32_20 : i32
    scf.if %50 {
      %c0_21 = arith.constant 0 : index
      %c0_22 = arith.constant 0 : index
      %51 = vector.load %arg8[%c0_21, %c0_22] : memref<4x32xf32, #tpu.memory_space<vmem>>, vector<4x32xf32>
      %c1 = arith.constant 1 : index
      %c0_23 = arith.constant 0 : index
      %52 = vector.load %arg6[%c1, %c0_23] : memref<5x32xf32, #tpu.memory_space<vmem>>, vector<1x32xf32>
      %c2 = arith.constant 2 : index
      %c0_24 = arith.constant 0 : index
      %53 = vector.load %arg6[%c2, %c0_24] : memref<5x32xf32, #tpu.memory_space<vmem>>, vector<1x32xf32>
      %c3 = arith.constant 3 : index
      %c0_25 = arith.constant 0 : index
      %54 = vector.load %arg6[%c3, %c0_25] : memref<5x32xf32, #tpu.memory_space<vmem>>, vector<1x32xf32>
      %c4 = arith.constant 4 : index
      %c0_26 = arith.constant 0 : index
      %55 = vector.load %arg6[%c4, %c0_26] : memref<5x32xf32, #tpu.memory_space<vmem>>, vector<1x1xf32>
      %cst_27 = arith.constant dense<0.000000e+00> : vector<32xf32>
      %56 = vector.multi_reduction <add>, %51, %cst_27 [0] : vector<4x32xf32> to vector<32xf32>
      %57 = vector.shape_cast %56 : vector<32xf32> to vector<1x32xf32>
      %cst_28 = arith.constant 4.000000e+00 : f32
      %58 = vector.broadcast %cst_28 : f32 to vector<1x32xf32>
      %59 = arith.divf %57, %58 : vector<1x32xf32>
      %60 = vector.broadcast %59 : vector<1x32xf32> to vector<4x32xf32>
      %61 = arith.subf %51, %60 : vector<4x32xf32>
      %62 = arith.mulf %61, %61 : vector<4x32xf32>
      %cst_29 = arith.constant dense<0.000000e+00> : vector<32xf32>
      %63 = vector.multi_reduction <add>, %62, %cst_29 [0] : vector<4x32xf32> to vector<32xf32>
      %64 = vector.shape_cast %63 : vector<32xf32> to vector<1x32xf32>
      %cst_30 = arith.constant 4.000000e+00 : f32
      %65 = vector.broadcast %cst_30 : f32 to vector<1x32xf32>
      %66 = arith.divf %64, %65 : vector<1x32xf32>
      %67 = vector.broadcast %59 : vector<1x32xf32> to vector<4x32xf32>
      %68 = arith.subf %51, %67 : vector<4x32xf32>
      %cst_31 = arith.constant 9.99999974E-6 : f32
      %69 = vector.broadcast %cst_31 : f32 to vector<1x32xf32>
      %70 = arith.addf %66, %69 : vector<1x32xf32>
      %71 = math.rsqrt %70 : vector<1x32xf32>
      %72 = vector.broadcast %71 : vector<1x32xf32> to vector<4x32xf32>
      %73 = arith.mulf %68, %72 : vector<4x32xf32>
      %74 = vector.broadcast %52 : vector<1x32xf32> to vector<4x32xf32>
      %75 = arith.mulf %73, %74 : vector<4x32xf32>
      %76 = vector.broadcast %53 : vector<1x32xf32> to vector<4x32xf32>
      %77 = arith.addf %75, %76 : vector<4x32xf32>
      %cst_32 = arith.constant 0.000000e+00 : f32
      %78 = vector.broadcast %cst_32 : f32 to vector<4x32xf32>
      %79 = arith.maximumf %77, %78 : vector<4x32xf32>
      %80 = vector.broadcast %54 : vector<1x32xf32> to vector<4x32xf32>
      %81 = arith.mulf %79, %80 : vector<4x32xf32>
      %cst_33 = arith.constant dense<0.000000e+00> : vector<4xf32>
      %82 = vector.multi_reduction <add>, %81, %cst_33 [1] : vector<4x32xf32> to vector<4xf32>
      %83 = vector.shape_cast %82 : vector<4xf32> to vector<4x1xf32>
      %84 = vector.broadcast %55 : vector<1x1xf32> to vector<4x1xf32>
      %85 = arith.addf %83, %84 : vector<4x1xf32>
      %cst_34 = arith.constant 5.000000e-01 : f32
      %86 = vector.broadcast %cst_34 : f32 to vector<4x1xf32>
      %87 = arith.mulf %86, %85 : vector<4x1xf32>
      %88 = math.tanh %87 : vector<4x1xf32>
      %cst_35 = arith.constant 1.000000e+00 : f32
      %89 = vector.broadcast %cst_35 : f32 to vector<4x1xf32>
      %90 = arith.addf %88, %89 : vector<4x1xf32>
      %cst_36 = arith.constant 5.000000e-01 : f32
      %91 = vector.broadcast %cst_36 : f32 to vector<4x1xf32>
      %92 = arith.mulf %91, %90 : vector<4x1xf32>
      %93 = tpu.transpose %92, [1, 0] : vector<4x1xf32> -> vector<1x4xf32>
      %c0_37 = arith.constant 0 : index
      %c0_38 = arith.constant 0 : index
      %94 = vector.load %arg7[%c0_37, %c0_38] : memref<1x4xf32, #tpu.memory_space<vmem>>, vector<1x4xf32>
      tpu.vector_store %arg7[%c0_37, %c0_38], %93 {strides = array<i32>} : memref<1x4xf32, #tpu.memory_space<vmem>>, vector<1x4xf32>,
    } else {
    }
    return
  }
  func.func @transform_0(%arg0: i32) -> (i32, i32, i32) {
    %c0_i32 = arith.constant 0 : i32
    %c0_i32_0 = arith.constant 0 : i32
    %c0_i32_1 = arith.constant 0 : i32
    return %arg0, %c0_i32, %c0_i32_0 : i32, i32, i32
  }
  func.func @transform_1(%arg0: i32) -> (i32, i32) {
    %c0_i32 = arith.constant 0 : i32
    %c0_i32_0 = arith.constant 0 : i32
    %c0_i32_1 = arith.constant 0 : i32
    return %c0_i32, %c0_i32_0 : i32, i32
  }
  func.func @transform_2(%arg0: i32) -> (i32, i32) {
    %c0_i32 = arith.constant 0 : i32
    %c0_i32_0 = arith.constant 0 : i32
    %c0_i32_1 = arith.constant 0 : i32
    return %c0_i32, %c0_i32_0 : i32, i32
  }
  func.func @transform_3(%arg0: i32) -> (i32, i32) {
    %c0_i32 = arith.constant 0 : i32
    %c0_i32_0 = arith.constant 0 : i32
    %c0_i32_1 = arith.constant 0 : i32
    return %c0_i32, %c0_i32_0 : i32, i32
  }
  func.func @transform_4(%arg0: i32) -> (i32, i32) {
    %c0_i32 = arith.constant 0 : i32
    %c0_i32_0 = arith.constant 0 : i32
    %c0_i32_1 = arith.constant 0 : i32
    return %c0_i32, %c0_i32_0 : i32, i32
  }
  func.func @transform_5(%arg0: i32) -> (i32, i32) {
    %c0_i32 = arith.constant 0 : i32
    %c0_i32_0 = arith.constant 0 : i32
    %c0_i32_1 = arith.constant 0 : i32
    return %c0_i32, %c0_i32_0 : i32, i32
  }
  func.func @transform_6(%arg0: i32) -> (i32, i32) {
    %c0_i32 = arith.constant 0 : i32
    %c0_i32_0 = arith.constant 0 : i32
    %c0_i32_1 = arith.constant 0 : i32
    return %c0_i32, %c0_i32_0 : i32, i32
  }
}

</mosaic_0001>

<llo_original>
// kernel: tpu_custom_call.1
$region0: #{tpu_custom_call.1}
  #allocation0 [shape = 'u32[]', space=smem, size = 0x4, offset = 0x4, fixed_abs, tag = 'smem constant byte address 0x4 - core index']
  #allocation1 [shape = 'u32[144,128]{1,0:T(1,128)}', space=vmem, size = 0x12000, scoped, tag = 'internal scratch']
  #allocation2 [shape = 'f32[4,32]{1,0:T(4,128)}', space=vmem, size = 0x800, scoped, tag = 'scratch operand']
  %s0 = inlined_call_operand.vmem [shape: f32[4,5,32], index: 0, kind: input, shape index: {}]
  %s1 = inlined_call_operand.vmem [shape: f32[32,4], index: 1, kind: input, shape index: {}]
  %s2 = inlined_call_operand.vmem [shape: f32[4,32], index: 2, kind: input, shape index: {}]
  %s3 = inlined_call_operand.vmem [shape: bf16[32,32], index: 3, kind: input, shape index: {}]
  %s4 = inlined_call_operand.vmem [shape: bf16[32,32], index: 4, kind: input, shape index: {}]
  %s5 = inlined_call_operand.vmem [shape: f32[5,32], index: 5, kind: input, shape index: {}]
  %s6 = inlined_call_operand.hbm [shape: f32[1,4], index: 6, kind: output, shape index: {}]
  %s7 = sld [smem:[#allocation0]]
  $region38: #{tpu_custom_call.1} parent=0
    _
  %s9 = ssub.s32 1, %s7
  %s10 = scalar_select 0, %s9, %s7
  $region1: #{tpu_custom_call.1} parent=0
    #allocation3 [shape = 'u8[512]{0}', space=vmem, size = 0x400, scoped, tag = 'output window, operand 0, single buffered']
    #allocation4 [shape = 's32[1]{0}', space=sflag, size = 0x4, scoped, tag = 'scoped memory for tpu_custom_call.1']
    %11 = vsyncpa [#allocation4], 0
    // Predicated region
    $region2: #{tpu_custom_call.1} parent=1 // pred_check
      _
    $region3: #{tpu_custom_call.1} parent=1 // pred_check_branch
      %13 = sbr.rel (0) target = $region5
    $region4: #{tpu_custom_call.1} parent=1 // pred_region
      _
    $region5: #{tpu_custom_call.1} parent=1 // pred_fallthru
      _
    // Predicated region
    $region6: #{tpu_custom_call.1} parent=1 // pred_check
      _
    $region7: #{tpu_custom_call.1} parent=1 // pred_check_branch
      %15 = sbr.rel (0) target = $region9
    $region8: #{tpu_custom_call.1} parent=1 // pred_region
      _
    $region9: #{tpu_custom_call.1} parent=1 // pred_fallthru
      _
    // Predicated region
    $region10: #{tpu_custom_call.1} parent=1 // pred_check
      _
    $region11: #{tpu_custom_call.1} parent=1 // pred_check_branch
      %17 = sbr.rel (0) target = $region13
    $region12: #{tpu_custom_call.1} parent=1 // pred_region
      _
    $region13: #{tpu_custom_call.1} parent=1 // pred_fallthru
      _
    // Predicated region
    $region14: #{tpu_custom_call.1} parent=1 // pred_check
      _
    $region15: #{tpu_custom_call.1} parent=1 // pred_check_branch
      %19 = sbr.rel (0) target = $region17
    $region16: #{tpu_custom_call.1} parent=1 // pred_region
      _
    $region17: #{tpu_custom_call.1} parent=1 // pred_fallthru
      _
    // Predicated region
    $region18: #{tpu_custom_call.1} parent=1 // pred_check
      _
    $region19: #{tpu_custom_call.1} parent=1 // pred_check_branch
      %21 = sbr.rel (0) target = $region21
    $region20: #{tpu_custom_call.1} parent=1 // pred_region
      _
    $region21: #{tpu_custom_call.1} parent=1 // pred_fallthru
      _
    // Predicated region
    $region22: #{tpu_custom_call.1} parent=1 // pred_check
      _
    $region23: #{tpu_custom_call.1} parent=1 // pred_check_branch
      %23 = sbr.rel (0) target = $region25
    $region24: #{tpu_custom_call.1} parent=1 // pred_region
      _
    $region25: #{tpu_custom_call.1} parent=1 // pred_fallthru
      _
    %v25 = vld [vmem:[%s0] sm:$0x1f]
    %v26 = vld [vmem:[%s0 + $0x8] sm:$0x1f]
    %v27 = vld [vmem:[%s0 + $0x10] sm:$0x1f]
    %v28 = vld [vmem:[%s0 + $0x18] sm:$0x1f]
    %v29 = vld [vmem:[%s1] sm:$0xff]
    %v30 = vld [vmem:[%s1 + $0x8] sm:$0xff]
    %v31 = vld [vmem:[%s1 + $0x10] sm:$0xff]
    %v32 = vld [vmem:[%s1 + $0x18] sm:$0xff]
    %v33 = vpack.c.bf16 %v30, %v29
    %v34 = vpack.c.bf16 %v32, %v31
    %v35 = vld [vmem:[%s2] sm:$0xf]
    %v36 = vlaneseq
    %v37 = vshrl.u32 %v36, 7
    %v38 = vsub.s32 0, %v37
    %v39 = vrot.slane %v25, %v38
    %v40 = vlaneseq
    %v41 = vshrl.u32 %v40, 7
    %v42 = vsub.s32 0, %v41
    %v43 = vrot.slane %v26, %v42
    %v44 = vlaneseq
    %v45 = vshrl.u32 %v44, 7
    %v46 = vsub.s32 0, %v45
    %v47 = vrot.slane %v27, %v46
    %v48 = vlaneseq
    %v49 = vshrl.u32 %v48, 7
    %v50 = vsub.s32 0, %v49
    %v51 = vrot.slane %v28, %v50
    %v52 = vmul.f32 %v39, %v25
    %v53 = vmul.f32 %v43, %v26
    %v54 = vmul.f32 %v47, %v27
    %v55 = vmul.f32 %v51, %v28
    %v61 = vunpack.c.l.s4 1966171168
    %v62 = vunpack.c.0.s8 %v61
    %v63 = vlaneseq
    %v64 = vshrl.u32 %v63, 7
    %v65 = vsub.s32 %v62, %v64
    %v66 = vrot.slane %v52, %v65
    %v67 = vcombine.high %v66, %v66
    %v69 = vunpack.c.l.s4 1966171168
    %v70 = vunpack.c.0.s8 %v69
    %v71 = vlaneseq
    %v72 = vshrl.u32 %v71, 7
    %v73 = vsub.s32 %v70, %v72
    %v74 = vrot.slane %v66, %v73
    %v76 = vunpack.c.l.s4 1966171168
    %v77 = vunpack.c.0.s8 %v76
    %v78 = vlaneseq
    %v79 = vshrl.u32 %v78, 7
    %v80 = vsub.s32 %v77, %v79
    %v81 = vrot.slane %v67, %v80
    %v82 = vcombine.high %v74, %v74
    %v83 = vcombine.high %v81, %v81
    %v85 = vunpack.c.l.s4 1966171168
    %v86 = vunpack.c.0.s8 %v85
    %v87 = vlaneseq
    %v88 = vshrl.u32 %v87, 7
    %v89 = vsub.s32 %v86, %v88
    %v90 = vrot.slane %v53, %v89
    %v91 = vcombine.high %v90, %v90
    %v93 = vunpack.c.l.s4 1966171168
    %v94 = vunpack.c.0.s8 %v93
    %v95 = vlaneseq
    %v96 = vshrl.u32 %v95, 7
    %v97 = vsub.s32 %v94, %v96
    %v98 = vrot.slane %v90, %v97
    %v100 = vunpack.c.l.s4 1966171168
    %v101 = vunpack.c.0.s8 %v100
    %v102 = vlaneseq
    %v103 = vshrl.u32 %v102, 7
    %v104 = vsub.s32 %v101, %v103
    %v105 = vrot.slane %v91, %v104
    %v106 = vcombine.high %v98, %v98
    %v107 = vcombine.high %v105, %v105
    %v109 = vunpack.c.l.s4 1966171168
    %v110 = vunpack.c.0.s8 %v109
    %v111 = vlaneseq
    %v112 = vshrl.u32 %v111, 7
    %v113 = vsub.s32 %v110, %v112
    %v114 = vrot.slane %v54, %v113
    %v115 = vcombine.high %v114, %v114
    %v117 = vunpack.c.l.s4 1966171168
    %v118 = vunpack.c.0.s8 %v117
    %v119 = vlaneseq
    %v120 = vshrl.u32 %v119, 7
    %v121 = vsub.s32 %v118, %v120
    %v122 = vrot.slane %v114, %v121
    %v124 = vunpack.c.l.s4 1966171168
    %v125 = vunpack.c.0.s8 %v124
    %v126 = vlaneseq
    %v127 = vshrl.u32 %v126, 7
    %v128 = vsub.s32 %v125, %v127
    %v129 = vrot.slane %v115, %v128
    %v130 = vcombine.high %v122, %v122
    %v131 = vcombine.high %v129, %v129
    %v133 = vunpack.c.l.s4 1966171168
    %v134 = vunpack.c.0.s8 %v133
    %v135 = vlaneseq
    %v136 = vshrl.u32 %v135, 7
    %v137 = vsub.s32 %v134, %v136
    %v138 = vrot.slane %v55, %v137
    %v139 = vcombine.high %v138, %v138
    %v141 = vunpack.c.l.s4 1966171168
    %v142 = vunpack.c.0.s8 %v141
    %v143 = vlaneseq
    %v144 = vshrl.u32 %v143, 7
    %v145 = vsub.s32 %v142, %v144
    %v146 = vrot.slane %v138, %v145
    %v148 = vunpack.c.l.s4 1966171168
    %v149 = vunpack.c.0.s8 %v148
    %v150 = vlaneseq
    %v151 = vshrl.u32 %v150, 7
    %v152 = vsub.s32 %v149, %v151
    %v153 = vrot.slane %v139, %v152
    %v154 = vcombine.high %v146, %v146
    %v155 = vcombine.high %v153, %v153
    %v156 = vcombine.low %v81, %v82
    %v157 = vcombine.low %v83, %v105
    %v158 = vcombine.low %v106, %v107
    %v159 = vcombine.low %v129, %v130
    %v161 = vunpack.c.l.s4 1966171168
    %v162 = vunpack.c.0.s8 %v161
    %v163 = vlaneseq
    %v164 = vshrl.u32 %v163, 7
    %v165 = vsub.s32 %v162, %v164
    %v166 = vrot.slane %v156, %v165
    %v168 = vunpack.c.l.s4 1966171168
    %v169 = vunpack.c.0.s8 %v168
    %v170 = vlaneseq
    %v171 = vshrl.u32 %v170, 7
    %v172 = vsub.s32 %v169, %v171
    %v173 = vrot.slane %v157, %v172
    %v175 = vunpack.c.l.s4 1966171168
    %v176 = vunpack.c.0.s8 %v175
    %v177 = vlaneseq
    %v178 = vshrl.u32 %v177, 7
    %v179 = vsub.s32 %v176, %v178
    %v180 = vrot.slane %v158, %v179
    %v182 = vunpack.c.l.s4 1966171168
    %v183 = vunpack.c.0.s8 %v182
    %v184 = vlaneseq
    %v185 = vshrl.u32 %v184, 7
    %v186 = vsub.s32 %v183, %v185
    %v187 = vrot.slane %v159, %v186
    %v188 = vcombine.low %v166, %v173
    %v189 = vcombine.low %v180, %v187
    %v191 = vunpack.c.l.s4 1966171168
    %v192 = vunpack.c.0.s8 %v191
    %v193 = vlaneseq
    %v194 = vshrl.u32 %v193, 7
    %v195 = vsub.s32 %v192, %v194
    %v196 = vrot.slane %v188, %v195
    %v198 = vunpack.c.l.s4 1966171168
    %v199 = vunpack.c.0.s8 %v198
    %v200 = vlaneseq
    %v201 = vshrl.u32 %v200, 7
    %v202 = vsub.s32 %v199, %v201
    %v203 = vrot.slane %v189, %v202
    %v204 = vcombine.low %v196, %v203
    %v205 = vcombine.low %v131, %v153
    %v206 = vcombine.low %v154, %v155
    %v208 = vunpack.c.l.s4 1966171168
    %v209 = vunpack.c.0.s8 %v208
    %v210 = vlaneseq
    %v211 = vshrl.u32 %v210, 7
    %v212 = vsub.s32 %v209, %v211
    %v213 = vrot.slane %v205, %v212
    %v215 = vunpack.c.l.s4 1966171168
    %v216 = vunpack.c.0.s8 %v215
    %v217 = vlaneseq
    %v218 = vshrl.u32 %v217, 7
    %v219 = vsub.s32 %v216, %v218
    %v220 = vrot.slane %v206, %v219
    %v221 = vcombine.low %v213, %v220
    %v223 = vunpack.c.l.s4 1966171168
    %v224 = vunpack.c.0.s8 %v223
    %v225 = vlaneseq
    %v226 = vshrl.u32 %v225, 7
    %v227 = vsub.s32 %v224, %v226
    %v228 = vrot.slane %v221, %v227
    %v231 = vpack.c.bf16 %v228, %v204
    %vm232 = vcmask 261120
    %v234 = vsel %vm232, %v231, 0
    %236 = vmatprep.subr.bf16.mxu0 0
    %237 = vmatpush1.bf16.msra.mxu0 %v33
    %238 = vmatprep.subr.bf16.mxu0 0
    %239 = vmatpush1.bf16.msra.mxu0 %v34
    %240 = vmatprep.subr.bf16.mxu0 0
    %241 = vmatpush1.bf16.msra.mxu0 0
    %242 = vmatprep.subr.bf16.mxu0 0
    %243 = vmatpush1.bf16.msra.mxu0 0
    %244 = vmatprep.subr.bf16.mxu0 0
    %245 = vmatpush1.bf16.msra.mxu0 0
    %246 = vmatprep.subr.bf16.mxu0 0
    %247 = vmatpush1.bf16.msra.mxu0 0
    %248 = vmatprep.subr.bf16.mxu0 0
    %249 = vmatpush1.bf16.msra.mxu0 0
    %250 = vmatprep.subr.bf16.mxu0 0
    %251 = vmatpush1.bf16.msra.mxu0 0
    %252 = vmatprep.subr.bf16.mxu0 0
    %253 = vmatpush1.bf16.msra.mxu0 0
    %254 = vmatprep.subr.bf16.mxu0 0
    %255 = vmatpush1.bf16.msra.mxu0 0
    %256 = vmatprep.subr.bf16.mxu0 0
    %257 = vmatpush1.bf16.msra.mxu0 0
    %258 = vmatprep.subr.bf16.mxu0 0
    %259 = vmatpush1.bf16.msra.mxu0 0
    %260 = vmatprep.subr.bf16.mxu0 0
    %261 = vmatpush1.bf16.msra.mxu0 0
    %262 = vmatprep.subr.bf16.mxu0 0
    %263 = vmatpush1.bf16.msra.mxu0 0
    %264 = vmatprep.subr.bf16.mxu0 0
    %265 = vmatpush1.bf16.msra.mxu0 0
    %266 = vmatprep.subr.bf16.mxu0 0
    %267 = vmatpush1.bf16.msra.mxu0 0
    %268 = vmatprep.mubr.bf16.mxu0 0
    %269 = vmatmul.mubr.bf16.gmra.mrb[0].mxu0 %v234
    %v270 = vpop.f32.mrb[0].mxu0
    %v271 = vadd.f32 0.0, %v270
    %v272 = vpop.f32.mrb[0].mxu0
    %v273 = vpop.f32.mrb[0].mxu0
    %v274 = vadd.f32 0.0, %v273
    %v275 = vpop.f32.mrb[0].mxu0
    %276 = vdwg.mxu0
    %v279 = vcombine.high %v271, %v271
    %v281 = vunpack.c.l.s4 1966171168
    %v282 = vunpack.c.0.s8 %v281
    %v283 = vlaneseq
    %v284 = vshrl.u32 %v283, 7
    %v285 = vsub.s32 %v282, %v284
    %v286 = vrot.slane %v271, %v285
    %v288 = vunpack.c.l.s4 1966171168
    %v289 = vunpack.c.0.s8 %v288
    %v290 = vlaneseq
    %v291 = vshrl.u32 %v290, 7
    %v292 = vsub.s32 %v289, %v291
    %v293 = vrot.slane %v279, %v292
    %v294 = vcombine.high %v286, %v286
    %v295 = vcombine.high %v293, %v293
    %v297 = vunpack.c.l.s4 1966171168
    %v298 = vunpack.c.0.s8 %v297
    %v299 = vlaneseq
    %v300 = vshrl.u32 %v299, 7
    %v301 = vsub.s32 %v298, %v300
    %v302 = vrot.slane %v286, %v301
    %v304 = vunpack.c.l.s4 1966171168
    %v305 = vunpack.c.0.s8 %v304
    %v306 = vlaneseq
    %v307 = vshrl.u32 %v306, 7
    %v308 = vsub.s32 %v305, %v307
    %v309 = vrot.slane %v293, %v308
    %v311 = vunpack.c.l.s4 1966171168
    %v312 = vunpack.c.0.s8 %v311
    %v313 = vlaneseq
    %v314 = vshrl.u32 %v313, 7
    %v315 = vsub.s32 %v312, %v314
    %v316 = vrot.slane %v294, %v315
    %v318 = vunpack.c.l.s4 1966171168
    %v319 = vunpack.c.0.s8 %v318
    %v320 = vlaneseq
    %v321 = vshrl.u32 %v320, 7
    %v322 = vsub.s32 %v319, %v321
    %v323 = vrot.slane %v295, %v322
    %v324 = vcombine.high %v302, %v302
    %v325 = vcombine.high %v309, %v309
    %v326 = vcombine.high %v316, %v316
    %v327 = vcombine.high %v323, %v323
    %v329 = vunpack.c.l.s4 1966171168
    %v330 = vunpack.c.0.s8 %v329
    %v331 = vlaneseq
    %v332 = vshrl.u32 %v331, 7
    %v333 = vsub.s32 %v330, %v332
    %v334 = vrot.slane %v274, %v333
    %v335 = vcombine.high %v334, %v334
    %v337 = vunpack.c.l.s4 1966171168
    %v338 = vunpack.c.0.s8 %v337
    %v339 = vlaneseq
    %v340 = vshrl.u32 %v339, 7
    %v341 = vsub.s32 %v338, %v340
    %v342 = vrot.slane %v334, %v341
    %v344 = vunpack.c.l.s4 1966171168
    %v345 = vunpack.c.0.s8 %v344
    %v346 = vlaneseq
    %v347 = vshrl.u32 %v346, 7
    %v348 = vsub.s32 %v345, %v347
    %v349 = vrot.slane %v335, %v348
    %v350 = vcombine.high %v342, %v342
    %v351 = vcombine.high %v349, %v349
    %v364 = vmul.f32 %v302, 0.35355338
    %v365 = vmul.f32 %v316, 0.35355338
    %v366 = vmul.f32 %v324, 0.35355338
    %v367 = vmul.f32 %v326, 0.35355338
    %v368 = vmul.f32 %v309, 0.35355338
    %v369 = vmul.f32 %v323, 0.35355338
    %v370 = vmul.f32 %v325, 0.35355338
    %v371 = vmul.f32 %v327, 0.35355338
    %v372 = vmul.f32 %v342, 0.35355338
    %v373 = vmul.f32 %v349, 0.35355338
    %v374 = vmul.f32 %v350, 0.35355338
    %v375 = vmul.f32 %v351, 0.35355338
    %v388 = vcombine.low %v364, %v365
    %v390 = vunpack.c.l.s4 1966171168
    %v391 = vunpack.c.0.s8 %v390
    %v392 = vlaneseq
    %v393 = vshrl.u32 %v392, 7
    %v394 = vsub.s32 %v391, %v393
    %v395 = vrot.slane %v388, %v394
    %v397 = vunpack.c.l.s4 1966171168
    %v398 = vunpack.c.0.s8 %v397
    %v399 = vlaneseq
    %v400 = vshrl.u32 %v399, 7
    %v401 = vsub.s32 %v398, %v400
    %v402 = vrot.slane %v366, %v401
    %v403 = vcombine.low %v395, %v402
    %v405 = vunpack.c.l.s4 1966171168
    %v406 = vunpack.c.0.s8 %v405
    %v407 = vlaneseq
    %v408 = vshrl.u32 %v407, 7
    %v409 = vsub.s32 %v406, %v408
    %v410 = vrot.slane %v403, %v409
    %v411 = vcombine.low %v367, %v368
    %v413 = vunpack.c.l.s4 1966171168
    %v414 = vunpack.c.0.s8 %v413
    %v415 = vlaneseq
    %v416 = vshrl.u32 %v415, 7
    %v417 = vsub.s32 %v414, %v416
    %v418 = vrot.slane %v411, %v417
    %v420 = vunpack.c.l.s4 1966171168
    %v421 = vunpack.c.0.s8 %v420
    %v422 = vlaneseq
    %v423 = vshrl.u32 %v422, 7
    %v424 = vsub.s32 %v421, %v423
    %v425 = vrot.slane %v369, %v424
    %v426 = vcombine.low %v418, %v425
    %v428 = vunpack.c.l.s4 1966171168
    %v429 = vunpack.c.0.s8 %v428
    %v430 = vlaneseq
    %v431 = vshrl.u32 %v430, 7
    %v432 = vsub.s32 %v429, %v431
    %v433 = vrot.slane %v426, %v432
    %v434 = vcombine.low %v370, %v371
    %v436 = vunpack.c.l.s4 1966171168
    %v437 = vunpack.c.0.s8 %v436
    %v438 = vlaneseq
    %v439 = vshrl.u32 %v438, 7
    %v440 = vsub.s32 %v437, %v439
    %v441 = vrot.slane %v434, %v440
    %v443 = vunpack.c.l.s4 1966171168
    %v444 = vunpack.c.0.s8 %v443
    %v445 = vlaneseq
    %v446 = vshrl.u32 %v445, 7
    %v447 = vsub.s32 %v444, %v446
    %v448 = vrot.slane %v372, %v447
    %v449 = vcombine.low %v441, %v448
    %v451 = vunpack.c.l.s4 1966171168
    %v452 = vunpack.c.0.s8 %v451
    %v453 = vlaneseq
    %v454 = vshrl.u32 %v453, 7
    %v455 = vsub.s32 %v452, %v454
    %v456 = vrot.slane %v449, %v455
    %v457 = vcombine.low %v373, %v374
    %v459 = vunpack.c.l.s4 1966171168
    %v460 = vunpack.c.0.s8 %v459
    %v461 = vlaneseq
    %v462 = vshrl.u32 %v461, 7
    %v463 = vsub.s32 %v460, %v462
    %v464 = vrot.slane %v457, %v463
    %v466 = vunpack.c.l.s4 1966171168
    %v467 = vunpack.c.0.s8 %v466
    %v468 = vlaneseq
    %v469 = vshrl.u32 %v468, 7
    %v470 = vsub.s32 %v467, %v469
    %v471 = vrot.slane %v375, %v470
    %v472 = vcombine.low %v464, %v471
    %v474 = vunpack.c.l.s4 1966171168
    %v475 = vunpack.c.0.s8 %v474
    %v476 = vlaneseq
    %v477 = vshrl.u32 %v476, 7
    %v478 = vsub.s32 %v475, %v477
    %v479 = vrot.slane %v472, %v478
    %vm484 = vcmask 26624
    %v485 = vsel %vm484, %v410, -inf
    %v486 = vrot.slane %v485, 4
    %v487 = vmax.f32 %v485, %v486
    %v488 = vrot.slane %v487, 2
    %v489 = vmax.f32 %v487, %v488
    %v490 = vrot.slane %v489, 1
    %v491 = vmax.f32 %v489, %v490
    %v492 = vsel %vm484, %v433, -inf
    %v493 = vrot.slane %v492, 4
    %v494 = vmax.f32 %v492, %v493
    %v495 = vrot.slane %v494, 2
    %v496 = vmax.f32 %v494, %v495
    %v497 = vrot.slane %v496, 1
    %v498 = vmax.f32 %v496, %v497
    %v499 = vsel %vm484, %v456, -inf
    %v500 = vrot.slane %v499, 4
    %v501 = vmax.f32 %v499, %v500
    %v502 = vrot.slane %v501, 2
    %v503 = vmax.f32 %v501, %v502
    %v504 = vrot.slane %v503, 1
    %v505 = vmax.f32 %v503, %v504
    %v506 = vsel %vm484, %v479, -inf
    %v507 = vrot.slane %v506, 4
    %v508 = vmax.f32 %v506, %v507
    %v509 = vrot.slane %v508, 2
    %v510 = vmax.f32 %v508, %v509
    %v511 = vrot.slane %v510, 1
    %v512 = vmax.f32 %v510, %v511
    %v518 = vunpack.c.l.s4 1966171168
    %v519 = vunpack.c.0.s8 %v518
    %v520 = vlaneseq
    %v521 = vshrl.u32 %v520, 7
    %v522 = vsub.s32 %v519, %v521
    %v523 = vrot.slane %v491, %v522
    %v524 = vcombine.high %v523, %v523
    %v526 = vunpack.c.l.s4 1966171168
    %v527 = vunpack.c.0.s8 %v526
    %v528 = vlaneseq
    %v529 = vshrl.u32 %v528, 7
    %v530 = vsub.s32 %v527, %v529
    %v531 = vrot.slane %v523, %v530
    %v533 = vunpack.c.l.s4 1966171168
    %v534 = vunpack.c.0.s8 %v533
    %v535 = vlaneseq
    %v536 = vshrl.u32 %v535, 7
    %v537 = vsub.s32 %v534, %v536
    %v538 = vrot.slane %v524, %v537
    %v539 = vcombine.high %v531, %v531
    %v541 = vunpack.c.l.s4 1966171168
    %v542 = vunpack.c.0.s8 %v541
    %v543 = vlaneseq
    %v544 = vshrl.u32 %v543, 7
    %v545 = vsub.s32 %v542, %v544
    %v546 = vrot.slane %v498, %v545
    %v547 = vcombine.high %v546, %v546
    %v549 = vunpack.c.l.s4 1966171168
    %v550 = vunpack.c.0.s8 %v549
    %v551 = vlaneseq
    %v552 = vshrl.u32 %v551, 7
    %v553 = vsub.s32 %v550, %v552
    %v554 = vrot.slane %v546, %v553
    %v556 = vunpack.c.l.s4 1966171168
    %v557 = vunpack.c.0.s8 %v556
    %v558 = vlaneseq
    %v559 = vshrl.u32 %v558, 7
    %v560 = vsub.s32 %v557, %v559
    %v561 = vrot.slane %v547, %v560
    %v562 = vcombine.high %v554, %v554
    %v564 = vunpack.c.l.s4 1966171168
    %v565 = vunpack.c.0.s8 %v564
    %v566 = vlaneseq
    %v567 = vshrl.u32 %v566, 7
    %v568 = vsub.s32 %v565, %v567
    %v569 = vrot.slane %v505, %v568
    %v570 = vcombine.high %v569, %v569
    %v572 = vunpack.c.l.s4 1966171168
    %v573 = vunpack.c.0.s8 %v572
    %v574 = vlaneseq
    %v575 = vshrl.u32 %v574, 7
    %v576 = vsub.s32 %v573, %v575
    %v577 = vrot.slane %v569, %v576
    %v579 = vunpack.c.l.s4 1966171168
    %v580 = vunpack.c.0.s8 %v579
    %v581 = vlaneseq
    %v582 = vshrl.u32 %v581, 7
    %v583 = vsub.s32 %v580, %v582
    %v584 = vrot.slane %v570, %v583
    %v585 = vcombine.high %v577, %v577
    %v587 = vunpack.c.l.s4 1966171168
    %v588 = vunpack.c.0.s8 %v587
    %v589 = vlaneseq
    %v590 = vshrl.u32 %v589, 7
    %v591 = vsub.s32 %v588, %v590
    %v592 = vrot.slane %v512, %v591
    %v593 = vcombine.high %v592, %v592
    %v595 = vunpack.c.l.s4 1966171168
    %v596 = vunpack.c.0.s8 %v595
    %v597 = vlaneseq
    %v598 = vshrl.u32 %v597, 7
    %v599 = vsub.s32 %v596, %v598
    %v600 = vrot.slane %v592, %v599
    %v602 = vunpack.c.l.s4 1966171168
    %v603 = vunpack.c.0.s8 %v602
    %v604 = vlaneseq
    %v605 = vshrl.u32 %v604, 7
    %v606 = vsub.s32 %v603, %v605
    %v607 = vrot.slane %v593, %v606
    %v608 = vcombine.high %v600, %v600
    %v621 = vsub.f32 %v364, %v531
    %v622 = vsub.f32 %v365, %v538
    %v623 = vsub.f32 %v366, %v539
    %v624 = vsub.f32 %v367, %v554
    %v625 = vsub.f32 %v368, %v561
    %v626 = vsub.f32 %v369, %v562
    %v627 = vsub.f32 %v370, %v577
    %v628 = vsub.f32 %v371, %v584
    %v629 = vsub.f32 %v372, %v585
    %v630 = vsub.f32 %v373, %v600
    %v631 = vsub.f32 %v374, %v607
    %v632 = vsub.f32 %v375, %v608
    %v633 = vmul.f32 %v621, 1.442695
    %v634 = vpow.pop %v633
    %v635 = vmul.f32 %v622, 1.442695
    %v636 = vpow.pop %v635
    %v637 = vmul.f32 %v623, 1.442695
    %v638 = vpow.pop %v637
    %v639 = vmul.f32 %v624, 1.442695
    %v640 = vpow.pop %v639
    %v641 = vmul.f32 %v625, 1.442695
    %v642 = vpow.pop %v641
    %v643 = vmul.f32 %v626, 1.442695
    %v644 = vpow.pop %v643
    %v645 = vmul.f32 %v627, 1.442695
    %v646 = vpow.pop %v645
    %v647 = vmul.f32 %v628, 1.442695
    %v648 = vpow.pop %v647
    %v649 = vmul.f32 %v629, 1.442695
    %v650 = vpow.pop %v649
    %v651 = vmul.f32 %v630, 1.442695
    %v652 = vpow.pop %v651
    %v653 = vmul.f32 %v631, 1.442695
    %v654 = vpow.pop %v653
    %v655 = vmul.f32 %v632, 1.442695
    %v656 = vpow.pop %v655
    %v669 = vcombine.low %v634, %v636
    %v671 = vunpack.c.l.s4 1966171168
    %v672 = vunpack.c.0.s8 %v671
    %v673 = vlaneseq
    %v674 = vshrl.u32 %v673, 7
    %v675 = vsub.s32 %v672, %v674
    %v676 = vrot.slane %v669, %v675
    %v678 = vunpack.c.l.s4 1966171168
    %v679 = vunpack.c.0.s8 %v678
    %v680 = vlaneseq
    %v681 = vshrl.u32 %v680, 7
    %v682 = vsub.s32 %v679, %v681
    %v683 = vrot.slane %v638, %v682
    %v684 = vcombine.low %v676, %v683
    %v686 = vunpack.c.l.s4 1966171168
    %v687 = vunpack.c.0.s8 %v686
    %v688 = vlaneseq
    %v689 = vshrl.u32 %v688, 7
    %v690 = vsub.s32 %v687, %v689
    %v691 = vrot.slane %v684, %v690
    %v692 = vcombine.low %v640, %v642
    %v694 = vunpack.c.l.s4 1966171168
    %v695 = vunpack.c.0.s8 %v694
    %v696 = vlaneseq
    %v697 = vshrl.u32 %v696, 7
    %v698 = vsub.s32 %v695, %v697
    %v699 = vrot.slane %v692, %v698
    %v701 = vunpack.c.l.s4 1966171168
    %v702 = vunpack.c.0.s8 %v701
    %v703 = vlaneseq
    %v704 = vshrl.u32 %v703, 7
    %v705 = vsub.s32 %v702, %v704
    %v706 = vrot.slane %v644, %v705
    %v707 = vcombine.low %v699, %v706
    %v709 = vunpack.c.l.s4 1966171168
    %v710 = vunpack.c.0.s8 %v709
    %v711 = vlaneseq
    %v712 = vshrl.u32 %v711, 7
    %v713 = vsub.s32 %v710, %v712
    %v714 = vrot.slane %v707, %v713
    %v715 = vcombine.low %v646, %v648
    %v717 = vunpack.c.l.s4 1966171168
    %v718 = vunpack.c.0.s8 %v717
    %v719 = vlaneseq
    %v720 = vshrl.u32 %v719, 7
    %v721 = vsub.s32 %v718, %v720
    %v722 = vrot.slane %v715, %v721
    %v724 = vunpack.c.l.s4 1966171168
    %v725 = vunpack.c.0.s8 %v724
    %v726 = vlaneseq
    %v727 = vshrl.u32 %v726, 7
    %v728 = vsub.s32 %v725, %v727
    %v729 = vrot.slane %v650, %v728
    %v730 = vcombine.low %v722, %v729
    %v732 = vunpack.c.l.s4 1966171168
    %v733 = vunpack.c.0.s8 %v732
    %v734 = vlaneseq
    %v735 = vshrl.u32 %v734, 7
    %v736 = vsub.s32 %v733, %v735
    %v737 = vrot.slane %v730, %v736
    %v738 = vcombine.low %v652, %v654
    %v740 = vunpack.c.l.s4 1966171168
    %v741 = vunpack.c.0.s8 %v740
    %v742 = vlaneseq
    %v743 = vshrl.u32 %v742, 7
    %v744 = vsub.s32 %v741, %v743
    %v745 = vrot.slane %v738, %v744
    %v747 = vunpack.c.l.s4 1966171168
    %v748 = vunpack.c.0.s8 %v747
    %v749 = vlaneseq
    %v750 = vshrl.u32 %v749, 7
    %v751 = vsub.s32 %v748, %v750
    %v752 = vrot.slane %v656, %v751
    %v753 = vcombine.low %v745, %v752
    %v755 = vunpack.c.l.s4 1966171168
    %v756 = vunpack.c.0.s8 %v755
    %v757 = vlaneseq
    %v758 = vshrl.u32 %v757, 7
    %v759 = vsub.s32 %v756, %v758
    %v760 = vrot.slane %v753, %v759
    %v765 = vsel %vm484, %v691, 0.0
    %v766 = vrot.slane %v765, 4
    %v767 = vadd.f32 %v765, %v766
    %v768 = vrot.slane %v767, 2
    %v769 = vadd.f32 %v767, %v768
    %v770 = vrot.slane %v769, 1
    %v771 = vadd.f32 %v769, %v770
    %v772 = vsel %vm484, %v714, 0.0
    %v773 = vrot.slane %v772, 4
    %v774 = vadd.f32 %v772, %v773
    %v775 = vrot.slane %v774, 2
    %v776 = vadd.f32 %v774, %v775
    %v777 = vrot.slane %v776, 1
    %v778 = vadd.f32 %v776, %v777
    %v779 = vsel %vm484, %v737, 0.0
    %v780 = vrot.slane %v779, 4
    %v781 = vadd.f32 %v779, %v780
    %v782 = vrot.slane %v781, 2
    %v783 = vadd.f32 %v781, %v782
    %v784 = vrot.slane %v783, 1
    %v785 = vadd.f32 %v783, %v784
    %v786 = vsel %vm484, %v760, 0.0
    %v787 = vrot.slane %v786, 4
    %v788 = vadd.f32 %v786, %v787
    %v789 = vrot.slane %v788, 2
    %v790 = vadd.f32 %v788, %v789
    %v791 = vrot.slane %v790, 1
    %v792 = vadd.f32 %v790, %v791
    %v793 = vrcp.pop %v771
    %v794 = vrcp.pop %v778
    %v795 = vrcp.pop %v785
    %v796 = vrcp.pop %v792
    %v802 = vunpack.c.l.s4 1966171168
    %v803 = vunpack.c.0.s8 %v802
    %v804 = vlaneseq
    %v805 = vshrl.u32 %v804, 7
    %v806 = vsub.s32 %v803, %v805
    %v807 = vrot.slane %v793, %v806
    %v808 = vcombine.high %v807, %v807
    %v810 = vunpack.c.l.s4 1966171168
    %v811 = vunpack.c.0.s8 %v810
    %v812 = vlaneseq
    %v813 = vshrl.u32 %v812, 7
    %v814 = vsub.s32 %v811, %v813
    %v815 = vrot.slane %v807, %v814
    %v817 = vunpack.c.l.s4 1966171168
    %v818 = vunpack.c.0.s8 %v817
    %v819 = vlaneseq
    %v820 = vshrl.u32 %v819, 7
    %v821 = vsub.s32 %v818, %v820
    %v822 = vrot.slane %v808, %v821
    %v823 = vcombine.high %v815, %v815
    %v825 = vunpack.c.l.s4 1966171168
    %v826 = vunpack.c.0.s8 %v825
    %v827 = vlaneseq
    %v828 = vshrl.u32 %v827, 7
    %v829 = vsub.s32 %v826, %v828
    %v830 = vrot.slane %v794, %v829
    %v831 = vcombine.high %v830, %v830
    %v833 = vunpack.c.l.s4 1966171168
    %v834 = vunpack.c.0.s8 %v833
    %v835 = vlaneseq
    %v836 = vshrl.u32 %v835, 7
    %v837 = vsub.s32 %v834, %v836
    %v838 = vrot.slane %v830, %v837
    %v840 = vunpack.c.l.s4 1966171168
    %v841 = vunpack.c.0.s8 %v840
    %v842 = vlaneseq
    %v843 = vshrl.u32 %v842, 7
    %v844 = vsub.s32 %v841, %v843
    %v845 = vrot.slane %v831, %v844
    %v846 = vcombine.high %v838, %v838
    %v848 = vunpack.c.l.s4 1966171168
    %v849 = vunpack.c.0.s8 %v848
    %v850 = vlaneseq
    %v851 = vshrl.u32 %v850, 7
    %v852 = vsub.s32 %v849, %v851
    %v853 = vrot.slane %v795, %v852
    %v854 = vcombine.high %v853, %v853
    %v856 = vunpack.c.l.s4 1966171168
    %v857 = vunpack.c.0.s8 %v856
    %v858 = vlaneseq
    %v859 = vshrl.u32 %v858, 7
    %v860 = vsub.s32 %v857, %v859
    %v861 = vrot.slane %v853, %v860
    %v863 = vunpack.c.l.s4 1966171168
    %v864 = vunpack.c.0.s8 %v863
    %v865 = vlaneseq
    %v866 = vshrl.u32 %v865, 7
    %v867 = vsub.s32 %v864, %v866
    %v868 = vrot.slane %v854, %v867
    %v869 = vcombine.high %v861, %v861
    %v871 = vunpack.c.l.s4 1966171168
    %v872 = vunpack.c.0.s8 %v871
    %v873 = vlaneseq
    %v874 = vshrl.u32 %v873, 7
    %v875 = vsub.s32 %v872, %v874
    %v876 = vrot.slane %v796, %v875
    %v877 = vcombine.high %v876, %v876
    %v879 = vunpack.c.l.s4 1966171168
    %v880 = vunpack.c.0.s8 %v879
    %v881 = vlaneseq
    %v882 = vshrl.u32 %v881, 7
    %v883 = vsub.s32 %v880, %v882
    %v884 = vrot.slane %v876, %v883
    %v886 = vunpack.c.l.s4 1966171168
    %v887 = vunpack.c.0.s8 %v886
    %v888 = vlaneseq
    %v889 = vshrl.u32 %v888, 7
    %v890 = vsub.s32 %v887, %v889
    %v891 = vrot.slane %v877, %v890
    %v892 = vcombine.high %v884, %v884
    %v905 = vmul.f32 %v634, %v815
    %v906 = vmul.f32 %v636, %v822
    %v907 = vmul.f32 %v638, %v823
    %v908 = vmul.f32 %v640, %v838
    %v909 = vmul.f32 %v642, %v845
    %v910 = vmul.f32 %v644, %v846
    %v911 = vmul.f32 %v646, %v861
    %v912 = vmul.f32 %v648, %v868
    %v913 = vmul.f32 %v650, %v869
    %v914 = vmul.f32 %v652, %v884
    %v915 = vmul.f32 %v654, %v891
    %v916 = vmul.f32 %v656, %v892
    %v929 = vcombine.low %v905, %v906
    %v930 = vcombine.low %v907, %v908
    %v931 = vcombine.low %v909, %v910
    %v932 = vcombine.low %v911, %v912
    %v934 = vunpack.c.l.s4 1966171168
    %v935 = vunpack.c.0.s8 %v934
    %v936 = vlaneseq
    %v937 = vshrl.u32 %v936, 7
    %v938 = vsub.s32 %v935, %v937
    %v939 = vrot.slane %v929, %v938
    %v941 = vunpack.c.l.s4 1966171168
    %v942 = vunpack.c.0.s8 %v941
    %v943 = vlaneseq
    %v944 = vshrl.u32 %v943, 7
    %v945 = vsub.s32 %v942, %v944
    %v946 = vrot.slane %v930, %v945
    %v948 = vunpack.c.l.s4 1966171168
    %v949 = vunpack.c.0.s8 %v948
    %v950 = vlaneseq
    %v951 = vshrl.u32 %v950, 7
    %v952 = vsub.s32 %v949, %v951
    %v953 = vrot.slane %v931, %v952
    %v955 = vunpack.c.l.s4 1966171168
    %v956 = vunpack.c.0.s8 %v955
    %v957 = vlaneseq
    %v958 = vshrl.u32 %v957, 7
    %v959 = vsub.s32 %v956, %v958
    %v960 = vrot.slane %v932, %v959
    %v961 = vcombine.low %v939, %v946
    %v962 = vcombine.low %v953, %v960
    %v964 = vunpack.c.l.s4 1966171168
    %v965 = vunpack.c.0.s8 %v964
    %v966 = vlaneseq
    %v967 = vshrl.u32 %v966, 7
    %v968 = vsub.s32 %v965, %v967
    %v969 = vrot.slane %v961, %v968
    %v971 = vunpack.c.l.s4 1966171168
    %v972 = vunpack.c.0.s8 %v971
    %v973 = vlaneseq
    %v974 = vshrl.u32 %v973, 7
    %v975 = vsub.s32 %v972, %v974
    %v976 = vrot.slane %v962, %v975
    %v977 = vcombine.low %v969, %v976
    %v978 = vcombine.low %v913, %v914
    %v979 = vcombine.low %v915, %v916
    %v981 = vunpack.c.l.s4 1966171168
    %v982 = vunpack.c.0.s8 %v981
    %v983 = vlaneseq
    %v984 = vshrl.u32 %v983, 7
    %v985 = vsub.s32 %v982, %v984
    %v986 = vrot.slane %v978, %v985
    %v988 = vunpack.c.l.s4 1966171168
    %v989 = vunpack.c.0.s8 %v988
    %v990 = vlaneseq
    %v991 = vshrl.u32 %v990, 7
    %v992 = vsub.s32 %v989, %v991
    %v993 = vrot.slane %v979, %v992
    %v994 = vcombine.low %v986, %v993
    %v996 = vunpack.c.l.s4 1966171168
    %v997 = vunpack.c.0.s8 %v996
    %v998 = vlaneseq
    %v999 = vshrl.u32 %v998, 7
    %v1000 = vsub.s32 %v997, %v999
    %v1001 = vrot.slane %v994, %v1000
    %vm1002 = vcmask 31744
    %v1003 = vsel %vm1002, %v977, 0
    %v1005 = vsel %vm1002, %v1001, 0
    %vm1007 = vcmask 1043456
    %v1009 = vsel %vm1007, %v35, 0
    %1011 = vmatprep.subr.mxu0 0.0
    %1012 = vmatpush1.msra.mxu0 %v1009
    %1013 = vmatprep.subr.mxu0 0.0
    %1014 = vmatpush1.msra.mxu0 0.0
    %1015 = vmatprep.subr.mxu0 0.0
    %1016 = vmatpush1.msra.mxu0 0.0
    %1017 = vmatprep.subr.mxu0 0.0
    %1018 = vmatpush1.msra.mxu0 0.0
    %1019 = vmatprep.subr.mxu0 0.0
    %1020 = vmatpush1.msra.mxu0 0.0
    %1021 = vmatprep.subr.mxu0 0.0
    %1022 = vmatpush1.msra.mxu0 0.0
    %1023 = vmatprep.subr.mxu0 0.0
    %1024 = vmatpush1.msra.mxu0 0.0
    %1025 = vmatprep.subr.mxu0 0.0
    %1026 = vmatpush1.msra.mxu0 0.0
    %1027 = vmatprep.subr.mxu0 0.0
    %1028 = vmatpush1.msra.mxu0 0.0
    %1029 = vmatprep.subr.mxu0 0.0
    %1030 = vmatpush1.msra.mxu0 0.0
    %1031 = vmatprep.subr.mxu0 0.0
    %1032 = vmatpush1.msra.mxu0 0.0
    %1033 = vmatprep.subr.mxu0 0.0
    %1034 = vmatpush1.msra.mxu0 0.0
    %1035 = vmatprep.subr.mxu0 0.0
    %1036 = vmatpush1.msra.mxu0 0.0
    %1037 = vmatprep.subr.mxu0 0.0
    %1038 = vmatpush1.msra.mxu0 0.0
    %1039 = vmatprep.subr.mxu0 0.0
    %1040 = vmatpush1.msra.mxu0 0.0
    %1041 = vmatprep.subr.mxu0 0.0
    %1042 = vmatpush1.msra.mxu0 0.0
    %1043 = vmatprep.subr.mxu0 0.0
    %1044 = vmatpush1.msra.mxu0 0.0
    %1045 = vmatprep.subr.mxu0 0.0
    %1046 = vmatpush1.msra.mxu0 0.0
    %1047 = vmatprep.subr.mxu0 0.0
    %1048 = vmatpush1.msra.mxu0 0.0
    %1049 = vmatprep.subr.mxu0 0.0
    %1050 = vmatpush1.msra.mxu0 0.0
    %1051 = vmatprep.subr.mxu0 0.0
    %1052 = vmatpush1.msra.mxu0 0.0
    %1053 = vmatprep.subr.mxu0 0.0
    %1054 = vmatpush1.msra.mxu0 0.0
    %1055 = vmatprep.subr.mxu0 0.0
    %1056 = vmatpush1.msra.mxu0 0.0
    %1057 = vmatprep.subr.mxu0 0.0
    %1058 = vmatpush1.msra.mxu0 0.0
    %1059 = vmatprep.subr.mxu0 0.0
    %1060 = vmatpush1.msra.mxu0 0.0
    %1061 = vmatprep.subr.mxu0 0.0
    %1062 = vmatpush1.msra.mxu0 0.0
    %1063 = vmatprep.subr.mxu0 0.0
    %1064 = vmatpush1.msra.mxu0 0.0
    %1065 = vmatprep.subr.mxu0 0.0
    %1066 = vmatpush1.msra.mxu0 0.0
    %1067 = vmatprep.subr.mxu0 0.0
    %1068 = vmatpush1.msra.mxu0 0.0
    %1069 = vmatprep.subr.mxu0 0.0
    %1070 = vmatpush1.msra.mxu0 0.0
    %1071 = vmatprep.subr.mxu0 0.0
    %1072 = vmatpush1.msra.mxu0 0.0
    %1073 = vmatprep.subr.mxu0 0.0
    %1074 = vmatpush1.msra.mxu0 0.0
    %1075 = vmatprep.mubr.f32.mxu0 0.0
    %1076 = vmatmul.mubr.f32.gmra.mrb[0].mxu0 %v1003
    %v1077 = vpop.f32.mrb[0].mxu0
    %v1078 = vadd.f32 0.0, %v1077
    %v1079 = vpop.f32.mrb[0].mxu0
    %1080 = vmatprep.mubr.f32.mxu0 0.0
    %1081 = vmatmul.mubr.f32.gmra.mrb[0].mxu0 %v1005
    %v1082 = vpop.f32.mrb[0].mxu0
    %v1083 = vadd.f32 0.0, %v1082
    %v1084 = vpop.f32.mrb[0].mxu0
    %1085 = vdwg.mxu0
    %v1088 = vcombine.high %v1078, %v1078
    %v1090 = vunpack.c.l.s4 1966171168
    %v1091 = vunpack.c.0.s8 %v1090
    %v1092 = vlaneseq
    %v1093 = vshrl.u32 %v1092, 7
    %v1094 = vsub.s32 %v1091, %v1093
    %v1095 = vrot.slane %v1078, %v1094
    %v1097 = vunpack.c.l.s4 1966171168
    %v1098 = vunpack.c.0.s8 %v1097
    %v1099 = vlaneseq
    %v1100 = vshrl.u32 %v1099, 7
    %v1101 = vsub.s32 %v1098, %v1100
    %v1102 = vrot.slane %v1088, %v1101
    %v1103 = vcombine.high %v1095, %v1095
    %v1104 = vcombine.high %v1102, %v1102
    %v1106 = vunpack.c.l.s4 1966171168
    %v1107 = vunpack.c.0.s8 %v1106
    %v1108 = vlaneseq
    %v1109 = vshrl.u32 %v1108, 7
    %v1110 = vsub.s32 %v1107, %v1109
    %v1111 = vrot.slane %v1095, %v1110
    %v1113 = vunpack.c.l.s4 1966171168
    %v1114 = vunpack.c.0.s8 %v1113
    %v1115 = vlaneseq
    %v1116 = vshrl.u32 %v1115, 7
    %v1117 = vsub.s32 %v1114, %v1116
    %v1118 = vrot.slane %v1102, %v1117
    %v1120 = vunpack.c.l.s4 1966171168
    %v1121 = vunpack.c.0.s8 %v1120
    %v1122 = vlaneseq
    %v1123 = vshrl.u32 %v1122, 7
    %v1124 = vsub.s32 %v1121, %v1123
    %v1125 = vrot.slane %v1103, %v1124
    %v1127 = vunpack.c.l.s4 1966171168
    %v1128 = vunpack.c.0.s8 %v1127
    %v1129 = vlaneseq
    %v1130 = vshrl.u32 %v1129, 7
    %v1131 = vsub.s32 %v1128, %v1130
    %v1132 = vrot.slane %v1104, %v1131
    %v1133 = vcombine.high %v1111, %v1111
    %v1134 = vcombine.high %v1118, %v1118
    %v1135 = vcombine.high %v1125, %v1125
    %v1136 = vcombine.high %v1132, %v1132
    %v1138 = vunpack.c.l.s4 1966171168
    %v1139 = vunpack.c.0.s8 %v1138
    %v1140 = vlaneseq
    %v1141 = vshrl.u32 %v1140, 7
    %v1142 = vsub.s32 %v1139, %v1141
    %v1143 = vrot.slane %v1083, %v1142
    %v1144 = vcombine.high %v1143, %v1143
    %v1146 = vunpack.c.l.s4 1966171168
    %v1147 = vunpack.c.0.s8 %v1146
    %v1148 = vlaneseq
    %v1149 = vshrl.u32 %v1148, 7
    %v1150 = vsub.s32 %v1147, %v1149
    %v1151 = vrot.slane %v1143, %v1150
    %v1153 = vunpack.c.l.s4 1966171168
    %v1154 = vunpack.c.0.s8 %v1153
    %v1155 = vlaneseq
    %v1156 = vshrl.u32 %v1155, 7
    %v1157 = vsub.s32 %v1154, %v1156
    %v1158 = vrot.slane %v1144, %v1157
    %v1159 = vcombine.high %v1151, %v1151
    %v1160 = vcombine.high %v1158, %v1158
    %v1178 = vunpack.c.l.s4 1966171168
    %v1179 = vunpack.c.0.s8 %v1178
    %v1180 = vlaneseq
    %v1181 = vshrl.u32 %v1180, 7
    %v1182 = vsub.s32 %v1179, %v1181
    %v1183 = vrot.slane %v25, %v1182
    %v1184 = vcombine.high %v1183, %v1183
    %v1186 = vunpack.c.l.s4 1966171168
    %v1187 = vunpack.c.0.s8 %v1186
    %v1188 = vlaneseq
    %v1189 = vshrl.u32 %v1188, 7
    %v1190 = vsub.s32 %v1187, %v1189
    %v1191 = vrot.slane %v1183, %v1190
    %v1193 = vunpack.c.l.s4 1966171168
    %v1194 = vunpack.c.0.s8 %v1193
    %v1195 = vlaneseq
    %v1196 = vshrl.u32 %v1195, 7
    %v1197 = vsub.s32 %v1194, %v1196
    %v1198 = vrot.slane %v1184, %v1197
    %v1199 = vcombine.high %v1191, %v1191
    %v1200 = vcombine.high %v1198, %v1198
    %v1202 = vunpack.c.l.s4 1966171168
    %v1203 = vunpack.c.0.s8 %v1202
    %v1204 = vlaneseq
    %v1205 = vshrl.u32 %v1204, 7
    %v1206 = vsub.s32 %v1203, %v1205
    %v1207 = vrot.slane %v26, %v1206
    %v1208 = vcombine.high %v1207, %v1207
    %v1210 = vunpack.c.l.s4 1966171168
    %v1211 = vunpack.c.0.s8 %v1210
    %v1212 = vlaneseq
    %v1213 = vshrl.u32 %v1212, 7
    %v1214 = vsub.s32 %v1211, %v1213
    %v1215 = vrot.slane %v1207, %v1214
    %v1217 = vunpack.c.l.s4 1966171168
    %v1218 = vunpack.c.0.s8 %v1217
    %v1219 = vlaneseq
    %v1220 = vshrl.u32 %v1219, 7
    %v1221 = vsub.s32 %v1218, %v1220
    %v1222 = vrot.slane %v1208, %v1221
    %v1223 = vcombine.high %v1215, %v1215
    %v1224 = vcombine.high %v1222, %v1222
    %v1226 = vunpack.c.l.s4 1966171168
    %v1227 = vunpack.c.0.s8 %v1226
    %v1228 = vlaneseq
    %v1229 = vshrl.u32 %v1228, 7
    %v1230 = vsub.s32 %v1227, %v1229
    %v1231 = vrot.slane %v27, %v1230
    %v1232 = vcombine.high %v1231, %v1231
    %v1234 = vunpack.c.l.s4 1966171168
    %v1235 = vunpack.c.0.s8 %v1234
    %v1236 = vlaneseq
    %v1237 = vshrl.u32 %v1236, 7
    %v1238 = vsub.s32 %v1235, %v1237
    %v1239 = vrot.slane %v1231, %v1238
    %v1241 = vunpack.c.l.s4 1966171168
    %v1242 = vunpack.c.0.s8 %v1241
    %v1243 = vlaneseq
    %v1244 = vshrl.u32 %v1243, 7
    %v1245 = vsub.s32 %v1242, %v1244
    %v1246 = vrot.slane %v1232, %v1245
    %v1247 = vcombine.high %v1239, %v1239
    %v1248 = vcombine.high %v1246, %v1246
    %v1250 = vunpack.c.l.s4 1966171168
    %v1251 = vunpack.c.0.s8 %v1250
    %v1252 = vlaneseq
    %v1253 = vshrl.u32 %v1252, 7
    %v1254 = vsub.s32 %v1251, %v1253
    %v1255 = vrot.slane %v28, %v1254
    %v1256 = vcombine.high %v1255, %v1255
    %v1258 = vunpack.c.l.s4 1966171168
    %v1259 = vunpack.c.0.s8 %v1258
    %v1260 = vlaneseq
    %v1261 = vshrl.u32 %v1260, 7
    %v1262 = vsub.s32 %v1259, %v1261
    %v1263 = vrot.slane %v1255, %v1262
    %v1265 = vunpack.c.l.s4 1966171168
    %v1266 = vunpack.c.0.s8 %v1265
    %v1267 = vlaneseq
    %v1268 = vshrl.u32 %v1267, 7
    %v1269 = vsub.s32 %v1266, %v1268
    %v1270 = vrot.slane %v1256, %v1269
    %v1271 = vcombine.high %v1263, %v1263
    %v1272 = vcombine.high %v1270, %v1270
    %v1285 = vmul.f32 %v1111, %v1198
    %v1286 = vmul.f32 %v1125, %v1199
    %v1287 = vmul.f32 %v1133, %v1200
    %v1288 = vmul.f32 %v1135, %v1222
    %v1289 = vmul.f32 %v1118, %v1223
    %v1290 = vmul.f32 %v1132, %v1224
    %v1291 = vmul.f32 %v1134, %v1246
    %v1292 = vmul.f32 %v1136, %v1247
    %v1293 = vmul.f32 %v1151, %v1248
    %v1294 = vmul.f32 %v1158, %v1270
    %v1295 = vmul.f32 %v1159, %v1271
    %v1296 = vmul.f32 %v1160, %v1272
    %v1309 = vcombine.low %v1285, %v1286
    %v1311 = vunpack.c.l.s4 1966171168
    %v1312 = vunpack.c.0.s8 %v1311
    %v1313 = vlaneseq
    %v1314 = vshrl.u32 %v1313, 7
    %v1315 = vsub.s32 %v1312, %v1314
    %v1316 = vrot.slane %v1309, %v1315
    %v1318 = vunpack.c.l.s4 1966171168
    %v1319 = vunpack.c.0.s8 %v1318
    %v1320 = vlaneseq
    %v1321 = vshrl.u32 %v1320, 7
    %v1322 = vsub.s32 %v1319, %v1321
    %v1323 = vrot.slane %v1287, %v1322
    %v1324 = vcombine.low %v1316, %v1323
    %v1326 = vunpack.c.l.s4 1966171168
    %v1327 = vunpack.c.0.s8 %v1326
    %v1328 = vlaneseq
    %v1329 = vshrl.u32 %v1328, 7
    %v1330 = vsub.s32 %v1327, %v1329
    %v1331 = vrot.slane %v1324, %v1330
    %v1332 = vcombine.low %v1288, %v1289
    %v1334 = vunpack.c.l.s4 1966171168
    %v1335 = vunpack.c.0.s8 %v1334
    %v1336 = vlaneseq
    %v1337 = vshrl.u32 %v1336, 7
    %v1338 = vsub.s32 %v1335, %v1337
    %v1339 = vrot.slane %v1332, %v1338
    %v1341 = vunpack.c.l.s4 1966171168
    %v1342 = vunpack.c.0.s8 %v1341
    %v1343 = vlaneseq
    %v1344 = vshrl.u32 %v1343, 7
    %v1345 = vsub.s32 %v1342, %v1344
    %v1346 = vrot.slane %v1290, %v1345
    %v1347 = vcombine.low %v1339, %v1346
    %v1349 = vunpack.c.l.s4 1966171168
    %v1350 = vunpack.c.0.s8 %v1349
    %v1351 = vlaneseq
    %v1352 = vshrl.u32 %v1351, 7
    %v1353 = vsub.s32 %v1350, %v1352
    %v1354 = vrot.slane %v1347, %v1353
    %v1355 = vcombine.low %v1291, %v1292
    %v1357 = vunpack.c.l.s4 1966171168
    %v1358 = vunpack.c.0.s8 %v1357
    %v1359 = vlaneseq
    %v1360 = vshrl.u32 %v1359, 7
    %v1361 = vsub.s32 %v1358, %v1360
    %v1362 = vrot.slane %v1355, %v1361
    %v1364 = vunpack.c.l.s4 1966171168
    %v1365 = vunpack.c.0.s8 %v1364
    %v1366 = vlaneseq
    %v1367 = vshrl.u32 %v1366, 7
    %v1368 = vsub.s32 %v1365, %v1367
    %v1369 = vrot.slane %v1293, %v1368
    %v1370 = vcombine.low %v1362, %v1369
    %v1372 = vunpack.c.l.s4 1966171168
    %v1373 = vunpack.c.0.s8 %v1372
    %v1374 = vlaneseq
    %v1375 = vshrl.u32 %v1374, 7
    %v1376 = vsub.s32 %v1373, %v1375
    %v1377 = vrot.slane %v1370, %v1376
    %v1378 = vcombine.low %v1294, %v1295
    %v1380 = vunpack.c.l.s4 1966171168
    %v1381 = vunpack.c.0.s8 %v1380
    %v1382 = vlaneseq
    %v1383 = vshrl.u32 %v1382, 7
    %v1384 = vsub.s32 %v1381, %v1383
    %v1385 = vrot.slane %v1378, %v1384
    %v1387 = vunpack.c.l.s4 1966171168
    %v1388 = vunpack.c.0.s8 %v1387
    %v1389 = vlaneseq
    %v1390 = vshrl.u32 %v1389, 7
    %v1391 = vsub.s32 %v1388, %v1390
    %v1392 = vrot.slane %v1296, %v1391
    %v1393 = vcombine.low %v1385, %v1392
    %v1395 = vunpack.c.l.s4 1966171168
    %v1396 = vunpack.c.0.s8 %v1395
    %v1397 = vlaneseq
    %v1398 = vshrl.u32 %v1397, 7
    %v1399 = vsub.s32 %v1396, %v1398
    %v1400 = vrot.slane %v1393, %v1399
    %vm1405 = vcmask 256000
    %v1406 = vsel %vm1405, %v1331, 0.0
    %v1407 = vrot.slane %v1406, 4
    %v1408 = vadd.f32 %v1406, %v1407
    %v1409 = vrot.slane %v1408, 2
    %v1410 = vadd.f32 %v1408, %v1409
    %v1411 = vrot.slane %v1410, 1
    %v1412 = vadd.f32 %v1410, %v1411
    %v1413 = vsel %vm1405, %v1354, 0.0
    %v1414 = vrot.slane %v1413, 4
    %v1415 = vadd.f32 %v1413, %v1414
    %v1416 = vrot.slane %v1415, 2
    %v1417 = vadd.f32 %v1415, %v1416
    %v1418 = vrot.slane %v1417, 1
    %v1419 = vadd.f32 %v1417, %v1418
    %v1420 = vsel %vm1405, %v1377, 0.0
    %v1421 = vrot.slane %v1420, 4
    %v1422 = vadd.f32 %v1420, %v1421
    %v1423 = vrot.slane %v1422, 2
    %v1424 = vadd.f32 %v1422, %v1423
    %v1425 = vrot.slane %v1424, 1
    %v1426 = vadd.f32 %v1424, %v1425
    %v1427 = vsel %vm1405, %v1400, 0.0
    %v1428 = vrot.slane %v1427, 4
    %v1429 = vadd.f32 %v1427, %v1428
    %v1430 = vrot.slane %v1429, 2
    %v1431 = vadd.f32 %v1429, %v1430
    %v1432 = vrot.slane %v1431, 1
    %v1433 = vadd.f32 %v1431, %v1432
    %v1434 = vpack.c.bf16 %v1412, %v1412
    %v1435 = vpack.c.bf16 %v1419, %v1419
    %v1436 = vpack.c.bf16 %v1426, %v1426
    %v1437 = vpack.c.bf16 %v1433, %v1433
    %v1438 = vld [vmem:[%s3] sm:$0xf]
    %v1439 = vld [vmem:[%s3 + $0x4] sm:$0xf]
    %v1440 = vld [vmem:[%s3 + $0x8] sm:$0xf]
    %v1441 = vld [vmem:[%s3 + $0xc] sm:$0xf]
    %v1442 = vpack.c.bf16 %v25, %v25
    %v1443 = vpack.c.bf16 %v26, %v26
    %v1444 = vpack.c.bf16 %v27, %v27
    %v1445 = vpack.c.bf16 %v28, %v28
    %v1446 = vld [vmem:[%s4] sm:$0xf]
    %v1447 = vld [vmem:[%s4 + $0x4] sm:$0xf]
    %v1448 = vld [vmem:[%s4 + $0x8] sm:$0xf]
    %v1449 = vld [vmem:[%s4 + $0xc] sm:$0xf]
    %v1454 = vunpack.c.l.b16 %v1442
    %v1455 = vunpack.c.l.b16 %v1443
    %v1456 = vunpack.c.l.b16 %v1444
    %v1457 = vunpack.c.l.b16 %v1445
    %v1458 = vrot.slane %v1454, 4
    %v1459 = vrot.slane %v1455, 3
    %vm1460 = vcmask 1041409
    %v1461 = vsel %vm1460, %v1459, %v1458
    %v1462 = vrot.slane %v1456, 2
    %vm1463 = vcmask 1042434
    %v1464 = vsel %vm1463, %v1462, %v1461
    %v1465 = vrot.slane %v1457, 1
    %vm1466 = vcmask 1043459
    %v1467 = vsel %vm1466, %v1465, %v1464
    %v1468 = vpack.c.b16 %v1467, %v1467
    %v1473 = vunpack.c.l.b16 %v1446
    %v1474 = vunpack.c.l.b16 %v1447
    %v1475 = vunpack.c.l.b16 %v1448
    %v1476 = vunpack.c.l.b16 %v1449
    %v1477 = vpack.c.b16 %v1474, %v1473
    %v1478 = vpack.c.b16 %v1476, %v1475
    %v1482 = vsel %vm232, %v1468, 0
    %1484 = vmatprep.subr.bf16.mxu0 0
    %1485 = vmatpush1.bf16.msra.mxu0 %v1477
    %1486 = vmatprep.subr.bf16.mxu0 0
    %1487 = vmatpush1.bf16.msra.mxu0 %v1478
    %1488 = vmatprep.subr.bf16.mxu0 0
    %1489 = vmatpush1.bf16.msra.mxu0 0
    %1490 = vmatprep.subr.bf16.mxu0 0
    %1491 = vmatpush1.bf16.msra.mxu0 0
    %1492 = vmatprep.subr.bf16.mxu0 0
    %1493 = vmatpush1.bf16.msra.mxu0 0
    %1494 = vmatprep.subr.bf16.mxu0 0
    %1495 = vmatpush1.bf16.msra.mxu0 0
    %1496 = vmatprep.subr.bf16.mxu0 0
    %1497 = vmatpush1.bf16.msra.mxu0 0
    %1498 = vmatprep.subr.bf16.mxu0 0
    %1499 = vmatpush1.bf16.msra.mxu0 0
    %1500 = vmatprep.subr.bf16.mxu0 0
    %1501 = vmatpush1.bf16.msra.mxu0 0
    %1502 = vmatprep.subr.bf16.mxu0 0
    %1503 = vmatpush1.bf16.msra.mxu0 0
    %1504 = vmatprep.subr.bf16.mxu0 0
    %1505 = vmatpush1.bf16.msra.mxu0 0
    %1506 = vmatprep.subr.bf16.mxu0 0
    %1507 = vmatpush1.bf16.msra.mxu0 0
    %1508 = vmatprep.subr.bf16.mxu0 0
    %1509 = vmatpush1.bf16.msra.mxu0 0
    %1510 = vmatprep.subr.bf16.mxu0 0
    %1511 = vmatpush1.bf16.msra.mxu0 0
    %1512 = vmatprep.subr.bf16.mxu0 0
    %1513 = vmatpush1.bf16.msra.mxu0 0
    %1514 = vmatprep.subr.bf16.mxu0 0
    %1515 = vmatpush1.bf16.msra.mxu0 0
    %1516 = vmatprep.mubr.bf16.mxu0 0
    %1517 = vmatmul.mubr.bf16.gmra.mrb[0].mxu0 %v1482
    %v1518 = vpop.f32.mrb[0].mxu0
    %v1519 = vadd.f32 0.0, %v1518
    %v1520 = vpop.f32.mrb[0].mxu0
    %v1521 = vpop.f32.mrb[0].mxu0
    %v1522 = vpop.f32.mrb[0].mxu0
    %1523 = vdwg.mxu0
    %v1528 = vunpack.c.l.b16 %v1434
    %v1529 = vunpack.c.l.b16 %v1435
    %v1530 = vunpack.c.l.b16 %v1436
    %v1531 = vunpack.c.l.b16 %v1437
    %v1532 = vsel %vm1460, %v1529, %v1528
    %v1533 = vsel %vm1463, %v1530, %v1532
    %v1534 = vsel %vm1466, %v1531, %v1533
    %v1535 = vpack.c.b16 %v1534, %v1534
    %v1540 = vunpack.c.l.b16 %v1438
    %v1541 = vunpack.c.l.b16 %v1439
    %v1542 = vunpack.c.l.b16 %v1440
    %v1543 = vunpack.c.l.b16 %v1441
    %v1544 = vpack.c.b16 %v1541, %v1540
    %v1545 = vpack.c.b16 %v1543, %v1542
    %v1549 = vsel %vm232, %v1535, 0
    %1551 = vmatprep.subr.bf16.mxu0 0
    %1552 = vmatpush1.bf16.msra.mxu0 %v1544
    %1553 = vmatprep.subr.bf16.mxu0 0
    %1554 = vmatpush1.bf16.msra.mxu0 %v1545
    %1555 = vmatprep.subr.bf16.mxu0 0
    %1556 = vmatpush1.bf16.msra.mxu0 0
    %1557 = vmatprep.subr.bf16.mxu0 0
    %1558 = vmatpush1.bf16.msra.mxu0 0
    %1559 = vmatprep.subr.bf16.mxu0 0
    %1560 = vmatpush1.bf16.msra.mxu0 0
    %1561 = vmatprep.subr.bf16.mxu0 0
    %1562 = vmatpush1.bf16.msra.mxu0 0
    %1563 = vmatprep.subr.bf16.mxu0 0
    %1564 = vmatpush1.bf16.msra.mxu0 0
    %1565 = vmatprep.subr.bf16.mxu0 0
    %1566 = vmatpush1.bf16.msra.mxu0 0
    %1567 = vmatprep.subr.bf16.mxu0 0
    %1568 = vmatpush1.bf16.msra.mxu0 0
    %1569 = vmatprep.subr.bf16.mxu0 0
    %1570 = vmatpush1.bf16.msra.mxu0 0
    %1571 = vmatprep.subr.bf16.mxu0 0
    %1572 = vmatpush1.bf16.msra.mxu0 0
    %1573 = vmatprep.subr.bf16.mxu0 0
    %1574 = vmatpush1.bf16.msra.mxu0 0
    %1575 = vmatprep.subr.bf16.mxu0 0
    %1576 = vmatpush1.bf16.msra.mxu0 0
    %1577 = vmatprep.subr.bf16.mxu0 0
    %1578 = vmatpush1.bf16.msra.mxu0 0
    %1579 = vmatprep.subr.bf16.mxu0 0
    %1580 = vmatpush1.bf16.msra.mxu0 0
    %1581 = vmatprep.subr.bf16.mxu0 0
    %1582 = vmatpush1.bf16.msra.mxu0 0
    %1583 = vmatprep.mubr.bf16.mxu0 0
    %1584 = vmatmul.mubr.bf16.gmra.mrb[0].mxu0 %v1549
    %v1585 = vpop.f32.mrb[0].mxu0
    %v1586 = vadd.f32 %v1519, %v1585
    %v1587 = vpop.f32.mrb[0].mxu0
    %v1588 = vpop.f32.mrb[0].mxu0
    %v1589 = vpop.f32.mrb[0].mxu0
    %1590 = vdwg.mxu0
    %v1591 = vld [vmem:[%s5] sm:$0x1]
    %v1592 = vlaneseq
    %v1593 = vshrl.u32 %v1592, 7
    %v1594 = vsub.s32 0, %v1593
    %v1595 = vrot.slane %v1591, %v1594
    %v1596 = vadd.f32 %v1586, %v1595
    %s1597 = smul.u32 0, 4
    %s1598 = scalar_lea.vmem [#allocation2], %s1597
    %vm1599 = vcmask 257024
    %1600 = vst.msk [vmem:[%s1598] sm:$0xf] %vm1599, %v1596
    %p1601 = scmp.eq.s32.totalorder 0, 0
    // Predicated region
    $region26: #{tpu_custom_call.1} parent=1 // pred_check
      %p1602 = pneg %p1601
    $region27: #{tpu_custom_call.1} parent=1 // pred_check_branch
      %1604 = sbr.rel (%p1602) target = $region29
    $region28: #{tpu_custom_call.1} parent=1 // pred_region
      %v1605 = vld [vmem:[#allocation2] sm:$0xf]
      %v1606 = vld [vmem:[%s5 + $0x1] sm:$0x1]
      %v1607 = vld [vmem:[%s5 + $0x2] sm:$0x1]
      %v1608 = vld [vmem:[%s5 + $0x3] sm:$0x1]
      %v1609 = vld [vmem:[%s5 + $0x4] sm:$0x1]
      %v1610 = vsel %vm1599, %v1605, 0.0
      %v1611 = vrot.slane %v1610, 4
      %v1612 = vadd.f32 %v1610, %v1611
      %v1613 = vrot.slane %v1612, 2
      %v1614 = vadd.f32 %v1612, %v1613
      %v1615 = vrot.slane %v1614, 1
      %v1616 = vadd.f32 %v1614, %v1615
      %v1617 = vrcp.pop 4.0
      %v1618 = vmul.f32 %v1616, %v1617
      %v1619 = vsub.f32 %v1605, %v1618
      %v1620 = vmul.f32 %v1619, %v1619
      %v1621 = vsel %vm1599, %v1620, 0.0
      %v1622 = vrot.slane %v1621, 4
      %v1623 = vadd.f32 %v1621, %v1622
      %v1624 = vrot.slane %v1623, 2
      %v1625 = vadd.f32 %v1623, %v1624
      %v1626 = vrot.slane %v1625, 1
      %v1627 = vadd.f32 %v1625, %v1626
      %v1628 = vmul.f32 %v1627, %v1617
      %v1629 = vadd.f32 %v1628, 1e-05
      %v1630 = vrsqrt.pop %v1629
      %v1631 = vmul.f32 %v1619, %v1630
      %v1632 = vlaneseq
      %v1633 = vshrl.u32 %v1632, 7
      %v1634 = vsub.s32 0, %v1633
      %v1635 = vrot.slane %v1606, %v1634
      %v1636 = vmul.f32 %v1631, %v1635
      %v1637 = vlaneseq
      %v1638 = vshrl.u32 %v1637, 7
      %v1639 = vsub.s32 0, %v1638
      %v1640 = vrot.slane %v1607, %v1639
      %v1641 = vadd.f32 %v1636, %v1640
      %v1642 = vmax.f32 %v1641, 0.0
      %v1643 = vlaneseq
      %v1644 = vshrl.u32 %v1643, 7
      %v1645 = vsub.s32 0, %v1644
      %v1646 = vrot.slane %v1608, %v1645
      %v1647 = vmul.f32 %v1642, %v1646
      %v1648 = vsel %vm1599, %v1647, 0.0
      %1649 = vadd.xlane.f32.xlu0 %v1648
      %v1650 = vpop.xlane.xlu0 %1649
      %v1651 = vlaneseq
      %v1652 = vshrl.u32 %v1651, 7
      %v1653 = vsub.s32 0, %v1652
      %v1654 = vrot.slane %v1609, %v1653
      %v1655 = vadd.f32 %v1650, %v1654
      %v1656 = vmul.f32 %v1655, 0.5
      %v1657 = vtanh.pop %v1656
      %v1658 = vadd.f32 %v1657, 1.0
      %v1659 = vmul.f32 %v1658, 0.5
      %1660 = vxpose.xlu0.b32.start [1/16] %v1659, 128
      %1661 = vxpose.xlu0.b32.cont [2/16] 0.0, 128
      %1662 = vxpose.xlu0.b32.cont [3/16] 0.0, 128
      %1663 = vxpose.xlu0.b32.cont [4/16] 0.0, 128
      %1664 = vxpose.xlu0.b32.cont [5/16] 0.0, 128
      %1665 = vxpose.xlu0.b32.cont [6/16] 0.0, 128
      %1666 = vxpose.xlu0.b32.cont [7/16] 0.0, 128
      %1667 = vxpose.xlu0.b32.cont [8/16] 0.0, 128
      %1668 = vxpose.xlu0.b32.cont [9/16] 0.0, 128
      %1669 = vxpose.xlu0.b32.cont [10/16] 0.0, 128
      %1670 = vxpose.xlu0.b32.cont [11/16] 0.0, 128
      %1671 = vxpose.xlu0.b32.cont [12/16] 0.0, 128
      %1672 = vxpose.xlu0.b32.cont [13/16] 0.0, 128
      %1673 = vxpose.xlu0.b32.cont [14/16] 0.0, 128
      %1674 = vxpose.xlu0.b32.cont [15/16] 0.0, 128
      %1675 = vxpose.xlu0.b32.end [16/16] 0.0, 128
      %v1676 = vpop.trf.xlu0
      %v1677 = vpop.trf.xlu0
      %v1678 = vpop.trf.xlu0
      %v1679 = vpop.trf.xlu0
      %v1680 = vpop.trf.xlu0
      %v1681 = vpop.trf.xlu0
      %v1682 = vpop.trf.xlu0
      %v1683 = vpop.trf.xlu0
      %v1684 = vpop.trf.xlu0
      %v1685 = vpop.trf.xlu0
      %v1686 = vpop.trf.xlu0
      %v1687 = vpop.trf.xlu0
      %v1688 = vpop.trf.xlu0
      %v1689 = vpop.trf.xlu0
      %v1690 = vpop.trf.xlu0
      %v1691 = vpop.trf.xlu0
      %vm1692 = vcmask 24576
      %1693 = vst.msk [vmem:[#allocation3] sm:$0x1] %vm1692, %v1676
    $region29: #{tpu_custom_call.1} parent=1 // pred_fallthru
      _
    // Predicated region
    $region30: #{tpu_custom_call.1} parent=1 // pred_check
      _
    $region31: #{tpu_custom_call.1} parent=1 // pred_check_branch
      %1695 = sbr.rel (0) target = $region33
    $region32: #{tpu_custom_call.1} parent=1 // pred_region
      %s1697 = ssub.s32 16, 16
      %1698 = vsyncadd [#allocation4], %s1697
      %s1700 = sshll.u32 [#allocation3], 4
      %s1701 = int_to_ptr.vmem [resolvable:$true] %s1700
      %1703 = dma.vmem_to_hbm [thread:$0]  %s1701, 16, %s6, [#allocation4]
    $region33: #{tpu_custom_call.1} parent=1 // pred_fallthru
      _
    // Predicated region
    $region34: #{tpu_custom_call.1} parent=1 // pred_check
      _
    $region35: #{tpu_custom_call.1} parent=1 // pred_check_branch
      %1705 = sbr.rel (0) target = $region37
    $region36: #{tpu_custom_call.1} parent=1 // pred_region
      %1706 = dma.done [#allocation4], 16
    $region37: #{tpu_custom_call.1} parent=1 // pred_fallthru
      _
    %1707 = vsyncpa [#allocation4], 1

</llo_original>
